<compile_context>
chip_gen: v6e
topology: v6e:2x2x1
jax: 0.10.0
libtpu: 0.0.40
codegen_flags: <defaults>
</compile_context>

<pallas_src>
import jax
import jax.numpy as jnp
from jax.experimental import pallas as pl
from jax.experimental.pallas import tpu as pltpu


TILE_N = 512  # lane-tile for the pooled-position (column) axis; multiple of 128


def _round_up(n, m):
    return ((n + m - 1) // m) * m


# ----------------------------- Pallas kernels ------------------------------

def _conv_relu_pool_kernel(p_ref, w_ref, b_ref, o_ref):
    """Fused conv-as-GEMM + bias + ReLU + 2x2 maxpool (transposed / lane-dense).

    p_ref: (4, Cin*K*K, tile_n) bf16  patch matrices, one per 2x2 pool position;
                                      columns are pooled output pixels (b,yo,xo).
    w_ref: (Cout, Cin*K*K)      bf16
    b_ref: (Cout, 1)            f32
    o_ref: (Cout, tile_n)       f32   lane-dense pooled activations.
    """
    w = w_ref[...]
    m = None
    for p in range(4):  # static unroll over the 2x2 pool window
        y = jnp.dot(w, p_ref[p], preferred_element_type=jnp.float32)
        m = y if m is None else jnp.maximum(m, y)
    # max(relu(y_p + b)) == relu(max_p(y_p) + b): bias is constant over the
    # window and relu is monotone, so this matches PyTorch relu -> maxpool.
    o_ref[...] = jnp.maximum(m + b_ref[...], 0.0)


def _tail_kernel(x_ref, w3_ref, b3_ref, w4_ref, b4_ref, w5_ref, b5_ref,
                 out_ref, latent_ref, latent_in_ref):
    """conv3 (5x5 on 5x5 input == matmul) + ReLU + fc1 + ReLU + fc2, fused."""
    h3 = jnp.dot(x_ref[...], w3_ref[...], preferred_element_type=jnp.float32)
    h3 = jnp.maximum(h3 + b3_ref[...], 0.0)                   # (B, 120) f32
    latent_in_ref[...] = h3
    h4 = jnp.dot(h3.astype(jnp.bfloat16), w4_ref[...],
                 preferred_element_type=jnp.float32)
    h4 = jnp.maximum(h4 + b4_ref[...], 0.0)                   # (B, 84) f32
    latent_ref[...] = h4
    out_ref[...] = jnp.dot(h4.astype(jnp.bfloat16), w5_ref[...],
                           preferred_element_type=jnp.float32) + b5_ref[...]


# ------------------------------ layer wrappers ------------------------------

def conv_relu_pool(x, w_mat, b_col, K, pad):
    """x: (B,Cin,H,W) f32; w_mat: (Cout,Cin*K*K) bf16; b_col: (Cout,1) f32.
    Returns relu(maxpool2x2(conv(x)))) as (B, Cout, Ho//2, Wo//2) f32."""
    B, Cin, H, W = x.shape
    Cout = w_mat.shape[0]
    if pad:
        x = jnp.pad(x, ((0, 0), (0, 0), (pad, pad), (pad, pad)))
    Hp, Wp = H + 2 * pad, W + 2 * pad
    Ho, Wo = Hp - K + 1, Wp - K + 1
    Hq, Wq = Ho // 2, Wo // 2                       # pooled output grid
    ncols = B * Hq * Wq
    npad = _round_up(ncols, TILE_N)

    # All K*K shifted windows: (K*K, B, Cin, Ho, Wo).
    taps = jnp.stack([x[:, :, i:i + Ho, j:j + Wo]
                      for i in range(K) for j in range(K)], axis=0)
    # Split conv-output pixels into pooled-grid x 2x2 window, then reorder to
    # (pool_pos, (Cin,ki,kj), (b,yq,xq)); the feature order matches the
    # PyTorch (Cout, Cin*K*K) weight flatten.
    taps = taps.reshape(K * K, B, Cin, Hq, 2, Wq, 2)
    taps = taps.transpose(4, 6, 2, 0, 1, 3, 5)      # (2,2,Cin,K*K,B,Hq,Wq)
    patches = taps.reshape(4, Cin * K * K, ncols)
    patches = jnp.pad(patches, ((0, 0), (0, 0), (0, npad - ncols)))
    patches = patches.astype(jnp.bfloat16)

    ckk = Cin * K * K
    out = pl.pallas_call(
        _conv_relu_pool_kernel,
        out_shape=jax.ShapeDtypeStruct((Cout, npad), jnp.float32),
        grid=(npad // TILE_N,),
        in_specs=[
            pl.BlockSpec((4, ckk, TILE_N), lambda i: (0, 0, i)),
            pl.BlockSpec((Cout, ckk), lambda i: (0, 0)),
            pl.BlockSpec((Cout, 1), lambda i: (0, 0)),
        ],
        out_specs=pl.BlockSpec((Cout, TILE_N), lambda i: (0, i)),
        compiler_params=pltpu.CompilerParams(
            dimension_semantics=("parallel",)),
    )(patches, w_mat, b_col)

    out = out[:, :ncols].reshape(Cout, B, Hq, Wq).transpose(1, 0, 2, 3)
    return out


def tail_fused(x400, w3, b3, w4, b4, w5, b5):
    """x400: (B,400) bf16 -> (logits (B,10), latent (B,84), latent_in (B,120))."""
    B = x400.shape[0]
    return pl.pallas_call(
        _tail_kernel,
        out_shape=(
            jax.ShapeDtypeStruct((B, 10), jnp.float32),
            jax.ShapeDtypeStruct((B, 84), jnp.float32),
            jax.ShapeDtypeStruct((B, 120), jnp.float32),
        ),
        grid=(1,),
        in_specs=[
            pl.BlockSpec((B, 400), lambda i: (0, 0)),
            pl.BlockSpec((400, 120), lambda i: (0, 0)),
            pl.BlockSpec((1, 120), lambda i: (0, 0)),
            pl.BlockSpec((120, 84), lambda i: (0, 0)),
            pl.BlockSpec((1, 84), lambda i: (0, 0)),
            pl.BlockSpec((84, 10), lambda i: (0, 0)),
            pl.BlockSpec((1, 10), lambda i: (0, 0)),
        ],
        out_specs=[
            pl.BlockSpec((B, 10), lambda i: (0, 0)),
            pl.BlockSpec((B, 84), lambda i: (0, 0)),
            pl.BlockSpec((B, 120), lambda i: (0, 0)),
        ],
        compiler_params=pltpu.CompilerParams(
            dimension_semantics=("arbitrary",)),
    )(x400, w3, b3, w4, b4, w5, b5)


# ----------------------------- model definition ----------------------------

def init_params(key, ch_in=1):
    ks = jax.random.split(key, 10)
    scale = 0.05

    def w(k, shape):
        return (scale * jax.random.normal(k, shape)).astype(jnp.float32)

    return {
        "conv1_w": w(ks[0], (6, ch_in, 5, 5)),
        "conv1_b": w(ks[1], (6,)),
        "conv2_w": w(ks[2], (16, 6, 5, 5)),
        "conv2_b": w(ks[3], (16,)),
        "conv3_w": w(ks[4], (120, 16, 5, 5)),
        "conv3_b": w(ks[5], (120,)),
        "fc1_w":   w(ks[6], (84, 120)),
        "fc1_b":   w(ks[7], (84,)),
        "fc2_w":   w(ks[8], (10, 84)),
        "fc2_b":   w(ks[9], (10,)),
    }


def prepare_params(params):
    """One-time weight prep (hoisted out of the forward): flatten convs to
    (Cout, Cin*K*K), transpose FC weights, cast matmul operands to bf16."""
    return {
        "w1": params["conv1_w"].reshape(6, -1).astype(jnp.bfloat16),      # (6, 25)
        "b1": params["conv1_b"].reshape(6, 1).astype(jnp.float32),
        "w2": params["conv2_w"].reshape(16, -1).astype(jnp.bfloat16),     # (16, 400)
        "b2": params["conv2_b"].reshape(16, 1).astype(jnp.float32),
        "w3": params["conv3_w"].reshape(120, -1).T.astype(jnp.bfloat16),  # (400, 120)
        "b3": params["conv3_b"].reshape(1, 120).astype(jnp.float32),
        "w4": params["fc1_w"].T.astype(jnp.bfloat16),                     # (120, 84)
        "b4": params["fc1_b"].reshape(1, 84).astype(jnp.float32),
        "w5": params["fc2_w"].T.astype(jnp.bfloat16),                     # (84, 10)
        "b5": params["fc2_b"].reshape(1, 10).astype(jnp.float32),
    }


def net_original_forward(prep, x):
    """x: (B, ch_in, 28, 28) NCHW.  Returns (output, (latent, latent_in))."""
    out = conv_relu_pool(x, prep["w1"], prep["b1"], K=5, pad=2)    # (B, 6, 14, 14)
    out = conv_relu_pool(out, prep["w2"], prep["b2"], K=5, pad=0)  # (B, 16, 5, 5)
    B = out.shape[0]
    x400 = out.reshape(B, 400).astype(jnp.bfloat16)                # PyTorch .view order
    logits, latent, latent_in = tail_fused(
        x400, prep["w3"], prep["b3"], prep["w4"], prep["b4"],
        prep["w5"], prep["b5"])
    # deepcopy(detach()) in the reference is plain value semantics under JAX.
    return logits, (latent, latent_in)


# ---------------------------------- main ------------------------------------

if __name__ == "__main__":
    key = jax.random.PRNGKey(0)
    k_param, k_x = jax.random.split(key)
    params = init_params(k_param, ch_in=1)
    prep = prepare_params(params)   # hoisted weight prep, done once
    # LeNet-5 geometry (conv3 reduces 5x5 -> 1x1, fc1 expects 120) => 28x28 input.
    x = jax.random.normal(k_x, (2, 1, 28, 28), dtype=jnp.float32)

    forward = jax.jit(net_original_forward)
    output, (latent, latent_in) = forward(prep, x)
    jax.block_until_ready(output)
    jax.block_until_ready(latent)
    jax.block_until_ready(latent_in)

    assert output.shape == (2, 10)
    assert latent.shape == (2, 84)
    assert latent_in.shape == (2, 120)
    print("KERNEL_OK")
</pallas_src>

<mosaic_0001>
module attributes {stable_mosaic.version = 11 : i64} {
  func.func @_conv_relu_pool_kernel(%arg0: i32, %arg1: memref<4x25x512xbf16, #tpu.memory_space<vmem>>, %arg2: memref<6x25xbf16, #tpu.memory_space<vmem>>, %arg3: memref<6x1xf32, #tpu.memory_space<vmem>>, %arg4: memref<6x512xf32, #tpu.memory_space<vmem>>) attributes {dimension_semantics = [#tpu.dimension_semantics<parallel>], iteration_bounds = array<i64: 1>, scalar_prefetch = 0 : i64, scratch_operands = 0 : i64, tpu.core_type = #tpu.core_type<tc>, window_params = [{transform_indices = @transform_0, window_bounds = array<i64: 4, 25, 512>}, {pipeline_mode = #tpu.pipeline_mode<synchronous>, transform_indices = @transform_1, window_bounds = array<i64: 6, 25>}, {pipeline_mode = #tpu.pipeline_mode<synchronous>, transform_indices = @transform_2, window_bounds = array<i64: 6, 1>}, {transform_indices = @transform_3, window_bounds = array<i64: 6, 512>}]} {
    %c0 = arith.constant 0 : index
    %c0_0 = arith.constant 0 : index
    %0 = vector.load %arg2[%c0, %c0_0] : memref<6x25xbf16, #tpu.memory_space<vmem>>, vector<6x25xbf16>
    %c0_1 = arith.constant 0 : index
    %c0_2 = arith.constant 0 : index
    %c0_3 = arith.constant 0 : index
    %1 = vector.load %arg1[%c0_1, %c0_2, %c0_3] : memref<4x25x512xbf16, #tpu.memory_space<vmem>>, vector<1x25x512xbf16>
    %2 = vector.shape_cast %1 : vector<1x25x512xbf16> to vector<25x512xbf16>
    %cst = arith.constant dense<0.000000e+00> : vector<6x512xf32>
    %3 = tpu.matmul %0, %2, %cst {dimension_numbers = #tpu.dot_dimension_numbers<[1], [0], [0], [1], [0, 0, 1, 1], [], []>} : vector<6x25xbf16>, vector<25x512xbf16>, vector<6x512xf32> -> vector<6x512xf32>
    %c1 = arith.constant 1 : index
    %c0_4 = arith.constant 0 : index
    %c0_5 = arith.constant 0 : index
    %4 = vector.load %arg1[%c1, %c0_4, %c0_5] : memref<4x25x512xbf16, #tpu.memory_space<vmem>>, vector<1x25x512xbf16>
    %5 = vector.shape_cast %4 : vector<1x25x512xbf16> to vector<25x512xbf16>
    %cst_6 = arith.constant dense<0.000000e+00> : vector<6x512xf32>
    %6 = tpu.matmul %0, %5, %cst_6 {dimension_numbers = #tpu.dot_dimension_numbers<[1], [0], [0], [1], [0, 0, 1, 1], [], []>} : vector<6x25xbf16>, vector<25x512xbf16>, vector<6x512xf32> -> vector<6x512xf32>
    %7 = arith.maximumf %3, %6 : vector<6x512xf32>
    %c2 = arith.constant 2 : index
    %c0_7 = arith.constant 0 : index
    %c0_8 = arith.constant 0 : index
    %8 = vector.load %arg1[%c2, %c0_7, %c0_8] : memref<4x25x512xbf16, #tpu.memory_space<vmem>>, vector<1x25x512xbf16>
    %9 = vector.shape_cast %8 : vector<1x25x512xbf16> to vector<25x512xbf16>
    %cst_9 = arith.constant dense<0.000000e+00> : vector<6x512xf32>
    %10 = tpu.matmul %0, %9, %cst_9 {dimension_numbers = #tpu.dot_dimension_numbers<[1], [0], [0], [1], [0, 0, 1, 1], [], []>} : vector<6x25xbf16>, vector<25x512xbf16>, vector<6x512xf32> -> vector<6x512xf32>
    %11 = arith.maximumf %7, %10 : vector<6x512xf32>
    %c3 = arith.constant 3 : index
    %c0_10 = arith.constant 0 : index
    %c0_11 = arith.constant 0 : index
    %12 = vector.load %arg1[%c3, %c0_10, %c0_11] : memref<4x25x512xbf16, #tpu.memory_space<vmem>>, vector<1x25x512xbf16>
    %13 = vector.shape_cast %12 : vector<1x25x512xbf16> to vector<25x512xbf16>
    %cst_12 = arith.constant dense<0.000000e+00> : vector<6x512xf32>
    %14 = tpu.matmul %0, %13, %cst_12 {dimension_numbers = #tpu.dot_dimension_numbers<[1], [0], [0], [1], [0, 0, 1, 1], [], []>} : vector<6x25xbf16>, vector<25x512xbf16>, vector<6x512xf32> -> vector<6x512xf32>
    %15 = arith.maximumf %11, %14 : vector<6x512xf32>
    %c0_13 = arith.constant 0 : index
    %c0_14 = arith.constant 0 : index
    %16 = vector.load %arg3[%c0_13, %c0_14] : memref<6x1xf32, #tpu.memory_space<vmem>>, vector<6x1xf32>
    %17 = vector.broadcast %16 : vector<6x1xf32> to vector<6x512xf32>
    %18 = arith.addf %15, %17 : vector<6x512xf32>
    %cst_15 = arith.constant 0.000000e+00 : f32
    %19 = vector.broadcast %cst_15 : f32 to vector<6x512xf32>
    %20 = arith.maximumf %18, %19 : vector<6x512xf32>
    %c0_16 = arith.constant 0 : index
    %c0_17 = arith.constant 0 : index
    %21 = vector.load %arg4[%c0_16, %c0_17] : memref<6x512xf32, #tpu.memory_space<vmem>>, vector<6x512xf32>
    tpu.vector_store %arg4[%c0_16, %c0_17], %20 {strides = array<i32>} : memref<6x512xf32, #tpu.memory_space<vmem>>, vector<6x512xf32>,
    return
  }
  func.func @transform_0(%arg0: i32) -> (i32, i32, i32) {
    %c0_i32 = arith.constant 0 : i32
    %c0_i32_0 = arith.constant 0 : i32
    %c0_i32_1 = arith.constant 0 : i32
    return %c0_i32, %c0_i32_0, %arg0 : i32, i32, i32
  }
  func.func @transform_1(%arg0: i32) -> (i32, i32) {
    %c0_i32 = arith.constant 0 : i32
    %c0_i32_0 = arith.constant 0 : i32
    %c0_i32_1 = arith.constant 0 : i32
    return %c0_i32, %c0_i32_0 : i32, i32
  }
  func.func @transform_2(%arg0: i32) -> (i32, i32) {
    %c0_i32 = arith.constant 0 : i32
    %c0_i32_0 = arith.constant 0 : i32
    %c0_i32_1 = arith.constant 0 : i32
    return %c0_i32, %c0_i32_0 : i32, i32
  }
  func.func @transform_3(%arg0: i32) -> (i32, i32) {
    %c0_i32 = arith.constant 0 : i32
    %c0_i32_0 = arith.constant 0 : i32
    return %c0_i32, %arg0 : i32, i32
  }
}

module attributes {stable_mosaic.version = 11 : i64} {
  func.func @_conv_relu_pool_kernel(%arg0: i32, %arg1: memref<4x150x512xbf16, #tpu.memory_space<vmem>>, %arg2: memref<16x150xbf16, #tpu.memory_space<vmem>>, %arg3: memref<16x1xf32, #tpu.memory_space<vmem>>, %arg4: memref<16x512xf32, #tpu.memory_space<vmem>>) attributes {dimension_semantics = [#tpu.dimension_semantics<parallel>], iteration_bounds = array<i64: 1>, scalar_prefetch = 0 : i64, scratch_operands = 0 : i64, tpu.core_type = #tpu.core_type<tc>, window_params = [{transform_indices = @transform_0, window_bounds = array<i64: 4, 150, 512>}, {pipeline_mode = #tpu.pipeline_mode<synchronous>, transform_indices = @transform_1, window_bounds = array<i64: 16, 150>}, {pipeline_mode = #tpu.pipeline_mode<synchronous>, transform_indices = @transform_2, window_bounds = array<i64: 16, 1>}, {transform_indices = @transform_3, window_bounds = array<i64: 16, 512>}]} {
    %c0 = arith.constant 0 : index
    %c0_0 = arith.constant 0 : index
    %0 = vector.load %arg2[%c0, %c0_0] : memref<16x150xbf16, #tpu.memory_space<vmem>>, vector<16x150xbf16>
    %c0_1 = arith.constant 0 : index
    %c0_2 = arith.constant 0 : index
    %c0_3 = arith.constant 0 : index
    %1 = vector.load %arg1[%c0_1, %c0_2, %c0_3] : memref<4x150x512xbf16, #tpu.memory_space<vmem>>, vector<1x150x512xbf16>
    %2 = vector.shape_cast %1 : vector<1x150x512xbf16> to vector<150x512xbf16>
    %cst = arith.constant dense<0.000000e+00> : vector<16x512xf32>
    %3 = tpu.matmul %0, %2, %cst {dimension_numbers = #tpu.dot_dimension_numbers<[1], [0], [0], [1], [0, 0, 1, 1], [], []>} : vector<16x150xbf16>, vector<150x512xbf16>, vector<16x512xf32> -> vector<16x512xf32>
    %c1 = arith.constant 1 : index
    %c0_4 = arith.constant 0 : index
    %c0_5 = arith.constant 0 : index
    %4 = vector.load %arg1[%c1, %c0_4, %c0_5] : memref<4x150x512xbf16, #tpu.memory_space<vmem>>, vector<1x150x512xbf16>
    %5 = vector.shape_cast %4 : vector<1x150x512xbf16> to vector<150x512xbf16>
    %cst_6 = arith.constant dense<0.000000e+00> : vector<16x512xf32>
    %6 = tpu.matmul %0, %5, %cst_6 {dimension_numbers = #tpu.dot_dimension_numbers<[1], [0], [0], [1], [0, 0, 1, 1], [], []>} : vector<16x150xbf16>, vector<150x512xbf16>, vector<16x512xf32> -> vector<16x512xf32>
    %7 = arith.maximumf %3, %6 : vector<16x512xf32>
    %c2 = arith.constant 2 : index
    %c0_7 = arith.constant 0 : index
    %c0_8 = arith.constant 0 : index
    %8 = vector.load %arg1[%c2, %c0_7, %c0_8] : memref<4x150x512xbf16, #tpu.memory_space<vmem>>, vector<1x150x512xbf16>
    %9 = vector.shape_cast %8 : vector<1x150x512xbf16> to vector<150x512xbf16>
    %cst_9 = arith.constant dense<0.000000e+00> : vector<16x512xf32>
    %10 = tpu.matmul %0, %9, %cst_9 {dimension_numbers = #tpu.dot_dimension_numbers<[1], [0], [0], [1], [0, 0, 1, 1], [], []>} : vector<16x150xbf16>, vector<150x512xbf16>, vector<16x512xf32> -> vector<16x512xf32>
    %11 = arith.maximumf %7, %10 : vector<16x512xf32>
    %c3 = arith.constant 3 : index
    %c0_10 = arith.constant 0 : index
    %c0_11 = arith.constant 0 : index
    %12 = vector.load %arg1[%c3, %c0_10, %c0_11] : memref<4x150x512xbf16, #tpu.memory_space<vmem>>, vector<1x150x512xbf16>
    %13 = vector.shape_cast %12 : vector<1x150x512xbf16> to vector<150x512xbf16>
    %cst_12 = arith.constant dense<0.000000e+00> : vector<16x512xf32>
    %14 = tpu.matmul %0, %13, %cst_12 {dimension_numbers = #tpu.dot_dimension_numbers<[1], [0], [0], [1], [0, 0, 1, 1], [], []>} : vector<16x150xbf16>, vector<150x512xbf16>, vector<16x512xf32> -> vector<16x512xf32>
    %15 = arith.maximumf %11, %14 : vector<16x512xf32>
    %c0_13 = arith.constant 0 : index
    %c0_14 = arith.constant 0 : index
    %16 = vector.load %arg3[%c0_13, %c0_14] : memref<16x1xf32, #tpu.memory_space<vmem>>, vector<16x1xf32>
    %17 = vector.broadcast %16 : vector<16x1xf32> to vector<16x512xf32>
    %18 = arith.addf %15, %17 : vector<16x512xf32>
    %cst_15 = arith.constant 0.000000e+00 : f32
    %19 = vector.broadcast %cst_15 : f32 to vector<16x512xf32>
    %20 = arith.maximumf %18, %19 : vector<16x512xf32>
    %c0_16 = arith.constant 0 : index
    %c0_17 = arith.constant 0 : index
    %21 = vector.load %arg4[%c0_16, %c0_17] : memref<16x512xf32, #tpu.memory_space<vmem>>, vector<16x512xf32>
    tpu.vector_store %arg4[%c0_16, %c0_17], %20 {strides = array<i32>} : memref<16x512xf32, #tpu.memory_space<vmem>>, vector<16x512xf32>,
    return
  }
  func.func @transform_0(%arg0: i32) -> (i32, i32, i32) {
    %c0_i32 = arith.constant 0 : i32
    %c0_i32_0 = arith.constant 0 : i32
    %c0_i32_1 = arith.constant 0 : i32
    return %c0_i32, %c0_i32_0, %arg0 : i32, i32, i32
  }
  func.func @transform_1(%arg0: i32) -> (i32, i32) {
    %c0_i32 = arith.constant 0 : i32
    %c0_i32_0 = arith.constant 0 : i32
    %c0_i32_1 = arith.constant 0 : i32
    return %c0_i32, %c0_i32_0 : i32, i32
  }
  func.func @transform_2(%arg0: i32) -> (i32, i32) {
    %c0_i32 = arith.constant 0 : i32
    %c0_i32_0 = arith.constant 0 : i32
    %c0_i32_1 = arith.constant 0 : i32
    return %c0_i32, %c0_i32_0 : i32, i32
  }
  func.func @transform_3(%arg0: i32) -> (i32, i32) {
    %c0_i32 = arith.constant 0 : i32
    %c0_i32_0 = arith.constant 0 : i32
    return %c0_i32, %arg0 : i32, i32
  }
}

module attributes {stable_mosaic.version = 11 : i64} {
  func.func @_tail_kernel(%arg0: i32, %arg1: memref<2x400xbf16, #tpu.memory_space<vmem>>, %arg2: memref<400x120xbf16, #tpu.memory_space<vmem>>, %arg3: memref<1x120xf32, #tpu.memory_space<vmem>>, %arg4: memref<120x84xbf16, #tpu.memory_space<vmem>>, %arg5: memref<1x84xf32, #tpu.memory_space<vmem>>, %arg6: memref<84x10xbf16, #tpu.memory_space<vmem>>, %arg7: memref<1x10xf32, #tpu.memory_space<vmem>>, %arg8: memref<2x10xf32, #tpu.memory_space<vmem>>, %arg9: memref<2x84xf32, #tpu.memory_space<vmem>>, %arg10: memref<2x120xf32, #tpu.memory_space<vmem>>) attributes {dimension_semantics = [#tpu.dimension_semantics<arbitrary>], iteration_bounds = array<i64: 1>, scalar_prefetch = 0 : i64, scratch_operands = 0 : i64, tpu.core_type = #tpu.core_type<tc>, window_params = [{pipeline_mode = #tpu.pipeline_mode<synchronous>, transform_indices = @transform_0, window_bounds = array<i64: 2, 400>}, {pipeline_mode = #tpu.pipeline_mode<synchronous>, transform_indices = @transform_1, window_bounds = array<i64: 400, 120>}, {pipeline_mode = #tpu.pipeline_mode<synchronous>, transform_indices = @transform_2, window_bounds = array<i64: 1, 120>}, {pipeline_mode = #tpu.pipeline_mode<synchronous>, transform_indices = @transform_3, window_bounds = array<i64: 120, 84>}, {pipeline_mode = #tpu.pipeline_mode<synchronous>, transform_indices = @transform_4, window_bounds = array<i64: 1, 84>}, {pipeline_mode = #tpu.pipeline_mode<synchronous>, transform_indices = @transform_5, window_bounds = array<i64: 84, 10>}, {pipeline_mode = #tpu.pipeline_mode<synchronous>, transform_indices = @transform_6, window_bounds = array<i64: 1, 10>}, {pipeline_mode = #tpu.pipeline_mode<synchronous>, transform_indices = @transform_7, window_bounds = array<i64: 2, 10>}, {pipeline_mode = #tpu.pipeline_mode<synchronous>, transform_indices = @transform_8, window_bounds = array<i64: 2, 84>}, {pipeline_mode = #tpu.pipeline_mode<synchronous>, transform_indices = @transform_9, window_bounds = array<i64: 2, 120>}]} {
    %c0 = arith.constant 0 : index
    %c0_0 = arith.constant 0 : index
    %0 = vector.load %arg1[%c0, %c0_0] : memref<2x400xbf16, #tpu.memory_space<vmem>>, vector<2x400xbf16>
    %c0_1 = arith.constant 0 : index
    %c0_2 = arith.constant 0 : index
    %1 = vector.load %arg2[%c0_1, %c0_2] : memref<400x120xbf16, #tpu.memory_space<vmem>>, vector<400x120xbf16>
    %cst = arith.constant dense<0.000000e+00> : vector<2x120xf32>
    %2 = tpu.matmul %0, %1, %cst {dimension_numbers = #tpu.dot_dimension_numbers<[1], [0], [0], [1], [0, 0, 1, 1], [], []>} : vector<2x400xbf16>, vector<400x120xbf16>, vector<2x120xf32> -> vector<2x120xf32>
    %c0_3 = arith.constant 0 : index
    %c0_4 = arith.constant 0 : index
    %3 = vector.load %arg3[%c0_3, %c0_4] : memref<1x120xf32, #tpu.memory_space<vmem>>, vector<1x120xf32>
    %4 = vector.broadcast %3 : vector<1x120xf32> to vector<2x120xf32>
    %5 = arith.addf %2, %4 : vector<2x120xf32>
    %cst_5 = arith.constant 0.000000e+00 : f32
    %6 = vector.broadcast %cst_5 : f32 to vector<2x120xf32>
    %7 = arith.maximumf %5, %6 : vector<2x120xf32>
    %c0_6 = arith.constant 0 : index
    %c0_7 = arith.constant 0 : index
    %8 = vector.load %arg10[%c0_6, %c0_7] : memref<2x120xf32, #tpu.memory_space<vmem>>, vector<2x120xf32>
    tpu.vector_store %arg10[%c0_6, %c0_7], %7 {strides = array<i32>} : memref<2x120xf32, #tpu.memory_space<vmem>>, vector<2x120xf32>,
    %9 = arith.truncf %7 : vector<2x120xf32> to vector<2x120xbf16>
    %c0_8 = arith.constant 0 : index
    %c0_9 = arith.constant 0 : index
    %10 = vector.load %arg4[%c0_8, %c0_9] : memref<120x84xbf16, #tpu.memory_space<vmem>>, vector<120x84xbf16>
    %cst_10 = arith.constant dense<0.000000e+00> : vector<2x84xf32>
    %11 = tpu.matmul %9, %10, %cst_10 {dimension_numbers = #tpu.dot_dimension_numbers<[1], [0], [0], [1], [0, 0, 1, 1], [], []>} : vector<2x120xbf16>, vector<120x84xbf16>, vector<2x84xf32> -> vector<2x84xf32>
    %c0_11 = arith.constant 0 : index
    %c0_12 = arith.constant 0 : index
    %12 = vector.load %arg5[%c0_11, %c0_12] : memref<1x84xf32, #tpu.memory_space<vmem>>, vector<1x84xf32>
    %13 = vector.broadcast %12 : vector<1x84xf32> to vector<2x84xf32>
    %14 = arith.addf %11, %13 : vector<2x84xf32>
    %cst_13 = arith.constant 0.000000e+00 : f32
    %15 = vector.broadcast %cst_13 : f32 to vector<2x84xf32>
    %16 = arith.maximumf %14, %15 : vector<2x84xf32>
    %c0_14 = arith.constant 0 : index
    %c0_15 = arith.constant 0 : index
    %17 = vector.load %arg9[%c0_14, %c0_15] : memref<2x84xf32, #tpu.memory_space<vmem>>, vector<2x84xf32>
    tpu.vector_store %arg9[%c0_14, %c0_15], %16 {strides = array<i32>} : memref<2x84xf32, #tpu.memory_space<vmem>>, vector<2x84xf32>,
    %18 = arith.truncf %16 : vector<2x84xf32> to vector<2x84xbf16>
    %c0_16 = arith.constant 0 : index
    %c0_17 = arith.constant 0 : index
    %19 = vector.load %arg6[%c0_16, %c0_17] : memref<84x10xbf16, #tpu.memory_space<vmem>>, vector<84x10xbf16>
    %cst_18 = arith.constant dense<0.000000e+00> : vector<2x10xf32>
    %20 = tpu.matmul %18, %19, %cst_18 {dimension_numbers = #tpu.dot_dimension_numbers<[1], [0], [0], [1], [0, 0, 1, 1], [], []>} : vector<2x84xbf16>, vector<84x10xbf16>, vector<2x10xf32> -> vector<2x10xf32>
    %c0_19 = arith.constant 0 : index
    %c0_20 = arith.constant 0 : index
    %21 = vector.load %arg7[%c0_19, %c0_20] : memref<1x10xf32, #tpu.memory_space<vmem>>, vector<1x10xf32>
    %22 = vector.broadcast %21 : vector<1x10xf32> to vector<2x10xf32>
    %23 = arith.addf %20, %22 : vector<2x10xf32>
    %c0_21 = arith.constant 0 : index
    %c0_22 = arith.constant 0 : index
    %24 = vector.load %arg8[%c0_21, %c0_22] : memref<2x10xf32, #tpu.memory_space<vmem>>, vector<2x10xf32>
    tpu.vector_store %arg8[%c0_21, %c0_22], %23 {strides = array<i32>} : memref<2x10xf32, #tpu.memory_space<vmem>>, vector<2x10xf32>,
    return
  }
  func.func @transform_0(%arg0: i32) -> (i32, i32) {
    %c0_i32 = arith.constant 0 : i32
    %c0_i32_0 = arith.constant 0 : i32
    %c0_i32_1 = arith.constant 0 : i32
    return %c0_i32, %c0_i32_0 : i32, i32
  }
  func.func @transform_1(%arg0: i32) -> (i32, i32) {
    %c0_i32 = arith.constant 0 : i32
    %c0_i32_0 = arith.constant 0 : i32
    %c0_i32_1 = arith.constant 0 : i32
    return %c0_i32, %c0_i32_0 : i32, i32
  }
  func.func @transform_2(%arg0: i32) -> (i32, i32) {
    %c0_i32 = arith.constant 0 : i32
    %c0_i32_0 = arith.constant 0 : i32
    %c0_i32_1 = arith.constant 0 : i32
    return %c0_i32, %c0_i32_0 : i32, i32
  }
  func.func @transform_3(%arg0: i32) -> (i32, i32) {
    %c0_i32 = arith.constant 0 : i32
    %c0_i32_0 = arith.constant 0 : i32
    %c0_i32_1 = arith.constant 0 : i32
    return %c0_i32, %c0_i32_0 : i32, i32
  }
  func.func @transform_4(%arg0: i32) -> (i32, i32) {
    %c0_i32 = arith.constant 0 : i32
    %c0_i32_0 = arith.constant 0 : i32
    %c0_i32_1 = arith.constant 0 : i32
    return %c0_i32, %c0_i32_0 : i32, i32
  }
  func.func @transform_5(%arg0: i32) -> (i32, i32) {
    %c0_i32 = arith.constant 0 : i32
    %c0_i32_0 = arith.constant 0 : i32
    %c0_i32_1 = arith.constant 0 : i32
    return %c0_i32, %c0_i32_0 : i32, i32
  }
  func.func @transform_6(%arg0: i32) -> (i32, i32) {
    %c0_i32 = arith.constant 0 : i32
    %c0_i32_0 = arith.constant 0 : i32
    %c0_i32_1 = arith.constant 0 : i32
    return %c0_i32, %c0_i32_0 : i32, i32
  }
  func.func @transform_7(%arg0: i32) -> (i32, i32) {
    %c0_i32 = arith.constant 0 : i32
    %c0_i32_0 = arith.constant 0 : i32
    %c0_i32_1 = arith.constant 0 : i32
    return %c0_i32, %c0_i32_0 : i32, i32
  }
  func.func @transform_8(%arg0: i32) -> (i32, i32) {
    %c0_i32 = arith.constant 0 : i32
    %c0_i32_0 = arith.constant 0 : i32
    %c0_i32_1 = arith.constant 0 : i32
    return %c0_i32, %c0_i32_0 : i32, i32
  }
  func.func @transform_9(%arg0: i32) -> (i32, i32) {
    %c0_i32 = arith.constant 0 : i32
    %c0_i32_0 = arith.constant 0 : i32
    %c0_i32_1 = arith.constant 0 : i32
    return %c0_i32, %c0_i32_0 : i32, i32
  }
}

</mosaic_0001>

<llo_original>
// kernel: net_original_forward.3
$region0: #{net_original_forward.3}
  #allocation0 [shape = 'u32[]', space=smem, size = 0x4, offset = 0x4, fixed_abs, tag = 'smem constant byte address 0x4 - core index']
  #allocation1 [shape = 'u32[144,128]{1,0:T(1,128)}', space=vmem, size = 0x12000, scoped, tag = 'internal scratch']
  %s0 = inlined_call_operand.vmem [shape: bf16[4,25,512], index: 0, kind: input, shape index: {}]
  %s1 = inlined_call_operand.vmem [shape: bf16[6,25], index: 1, kind: input, shape index: {}]
  %s2 = inlined_call_operand.vmem [shape: f32[6,1], index: 2, kind: input, shape index: {}]
  %s3 = inlined_call_operand.vmem [shape: f32[6,512], index: 3, kind: output, shape index: {}]
  %s4 = sld [smem:[#allocation0]]
  $region22: #{net_original_forward.3} parent=0
    _
  %s6 = ssub.s32 1, %s4
  %s7 = scalar_select 0, %s6, %s4
  // Predicated region
  $region2: #{net_original_forward.3} parent=0 // pred_check
    _
  $region3: #{net_original_forward.3} parent=0 // pred_check_branch
    %9 = sbr.rel (0) target = $region5
  $region4: #{net_original_forward.3} parent=0 // pred_region
    _
  $region5: #{net_original_forward.3} parent=0 // pred_fallthru
    _
  // Predicated region
  $region6: #{net_original_forward.3} parent=0 // pred_check
    _
  $region7: #{net_original_forward.3} parent=0 // pred_check_branch
    %11 = sbr.rel (0) target = $region9
  $region8: #{net_original_forward.3} parent=0 // pred_region
    _
  $region9: #{net_original_forward.3} parent=0 // pred_fallthru
    _
  // Predicated region
  $region10: #{net_original_forward.3} parent=0 // pred_check
    _
  $region11: #{net_original_forward.3} parent=0 // pred_check_branch
    %13 = sbr.rel (0) target = $region13
  $region12: #{net_original_forward.3} parent=0 // pred_region
    _
  $region13: #{net_original_forward.3} parent=0 // pred_fallthru
    _
  %v15 = vld [vmem:[%s1] sm:$0x7]
  %v16 = vld [vmem:[%s0] sm:$0xff]
  %v17 = vld [vmem:[%s0 + $0x8] sm:$0xff]
  %v18 = vld [vmem:[%s0 + $0x10] sm:$0xff]
  %v19 = vld [vmem:[%s0 + $0x18] sm:$0xff]
  %v20 = vld [vmem:[%s0 + $0x20] sm:$0xff]
  %v21 = vld [vmem:[%s0 + $0x28] sm:$0xff]
  %v22 = vld [vmem:[%s0 + $0x30] sm:$0x11]
  %v23 = vld [vmem:[%s0 + $0x38] sm:$0x11]
  %v32 = vunpack.c.l.b16 %v16
  %v33 = vunpack.c.h.b16 %v16
  %v34 = vunpack.c.l.b16 %v17
  %v35 = vunpack.c.h.b16 %v17
  %v36 = vunpack.c.l.b16 %v18
  %v37 = vunpack.c.h.b16 %v18
  %v38 = vunpack.c.l.b16 %v19
  %v39 = vunpack.c.h.b16 %v19
  %v40 = vunpack.c.l.b16 %v20
  %v41 = vunpack.c.h.b16 %v20
  %v42 = vunpack.c.l.b16 %v21
  %v43 = vunpack.c.h.b16 %v21
  %v44 = vunpack.c.l.b16 %v22
  %v45 = vunpack.c.h.b16 %v22
  %v46 = vunpack.c.l.b16 %v23
  %v47 = vunpack.c.h.b16 %v23
  %v48 = vpack.c.b16 %v36, %v32
  %v49 = vpack.c.b16 %v37, %v33
  %v50 = vpack.c.b16 %v38, %v34
  %v51 = vpack.c.b16 %v39, %v35
  %v52 = vpack.c.b16 %v44, %v40
  %v53 = vpack.c.b16 %v45, %v41
  %v54 = vpack.c.b16 %v46, %v42
  %v55 = vpack.c.b16 %v47, %v43
  %vm60 = vcmask 203776
  %v62 = vsel %vm60, %v15, 0
  %vm64 = vcmask 1043456
  %vm65 = vcmask 1044480
  %v66 = vsel %vm64, 4294967295, 65535
  %v67 = vsel %vm65, %v66, 0
  %v69 = vand.u32 %v52, %v67
  %v72 = vand.u32 %v53, %v67
  %v75 = vand.u32 %v54, %v67
  %v78 = vand.u32 %v55, %v67
  %80 = vmatprep.subr.bf16.mxu0 0
  %81 = vmatpush1.bf16.msra.mxu0 0
  %82 = vmatprep.subr.bf16.mxu0 0
  %83 = vmatpush1.bf16.msra.mxu0 0
  %84 = vmatprep.subr.bf16.mxu0 0
  %85 = vmatpush1.bf16.msra.mxu0 0
  %86 = vmatprep.subr.bf16.mxu0 0
  %87 = vmatpush1.bf16.msra.mxu0 0
  %88 = vmatprep.subr.bf16.mxu0 0
  %89 = vmatpush1.bf16.msra.mxu0 0
  %90 = vmatprep.subr.bf16.mxu0 0
  %91 = vmatpush1.bf16.msra.mxu0 0
  %92 = vmatprep.subr.bf16.mxu0 %v72
  %93 = vmatpush1.bf16.msra.mxu0 %v69
  %94 = vmatprep.subr.bf16.mxu0 %v49
  %95 = vmatpush1.bf16.msra.mxu0 %v48
  %96 = vmatprep.subr.bf16.mxu0 0
  %97 = vmatpush2.bf16.msra.mxu0 0
  %98 = vmatprep.subr.bf16.mxu0 0
  %99 = vmatpush2.bf16.msra.mxu0 0
  %100 = vmatprep.subr.bf16.mxu0 0
  %101 = vmatpush2.bf16.msra.mxu0 0
  %102 = vmatprep.subr.bf16.mxu0 0
  %103 = vmatpush2.bf16.msra.mxu0 0
  %104 = vmatprep.subr.bf16.mxu0 0
  %105 = vmatpush2.bf16.msra.mxu0 0
  %106 = vmatprep.subr.bf16.mxu0 0
  %107 = vmatpush2.bf16.msra.mxu0 0
  %108 = vmatprep.subr.bf16.mxu0 0
  %109 = vmatpush2.bf16.msra.mxu0 0
  %110 = vmatprep.subr.bf16.mxu0 0
  %111 = vmatpush2.bf16.msra.mxu0 0
  %112 = vmatprep.mubr.bf16.mxu0 0
  %113 = vmatmul.mubr.bf16.gmra.mxu0 %v62
  %v114 = vpop.f32.mrf.mxu0
  %v115 = vadd.f32 0.0, %v114
  %v116 = vpop.f32.mrf.mxu0
  %v117 = vadd.f32 0.0, %v116
  %v118 = vpop.f32.mrf.mxu0
  %v119 = vpop.f32.mrf.mxu0
  %120 = vdwg.mxu0
  %121 = vmatprep.subr.bf16.mxu0 0
  %122 = vmatpush1.bf16.msra.mxu0 0
  %123 = vmatprep.subr.bf16.mxu0 0
  %124 = vmatpush1.bf16.msra.mxu0 0
  %125 = vmatprep.subr.bf16.mxu0 0
  %126 = vmatpush1.bf16.msra.mxu0 0
  %127 = vmatprep.subr.bf16.mxu0 0
  %128 = vmatpush1.bf16.msra.mxu0 0
  %129 = vmatprep.subr.bf16.mxu0 0
  %130 = vmatpush1.bf16.msra.mxu0 0
  %131 = vmatprep.subr.bf16.mxu0 0
  %132 = vmatpush1.bf16.msra.mxu0 0
  %133 = vmatprep.subr.bf16.mxu0 %v78
  %134 = vmatpush1.bf16.msra.mxu0 %v75
  %135 = vmatprep.subr.bf16.mxu0 %v51
  %136 = vmatpush1.bf16.msra.mxu0 %v50
  %137 = vmatprep.subr.bf16.mxu0 0
  %138 = vmatpush2.bf16.msra.mxu0 0
  %139 = vmatprep.subr.bf16.mxu0 0
  %140 = vmatpush2.bf16.msra.mxu0 0
  %141 = vmatprep.subr.bf16.mxu0 0
  %142 = vmatpush2.bf16.msra.mxu0 0
  %143 = vmatprep.subr.bf16.mxu0 0
  %144 = vmatpush2.bf16.msra.mxu0 0
  %145 = vmatprep.subr.bf16.mxu0 0
  %146 = vmatpush2.bf16.msra.mxu0 0
  %147 = vmatprep.subr.bf16.mxu0 0
  %148 = vmatpush2.bf16.msra.mxu0 0
  %149 = vmatprep.subr.bf16.mxu0 0
  %150 = vmatpush2.bf16.msra.mxu0 0
  %151 = vmatprep.subr.bf16.mxu0 0
  %152 = vmatpush2.bf16.msra.mxu0 0
  %153 = vmatprep.mubr.bf16.mxu0 0
  %154 = vmatmul.mubr.bf16.gmra.mxu0 %v62
  %v155 = vpop.f32.mrf.mxu0
  %v156 = vadd.f32 0.0, %v155
  %v157 = vpop.f32.mrf.mxu0
  %v158 = vadd.f32 0.0, %v157
  %v159 = vpop.f32.mrf.mxu0
  %v160 = vpop.f32.mrf.mxu0
  %161 = vdwg.mxu0
  %s162 = scalar_lea.vmem %s0, 64
  %v163 = vld [vmem:[%s162] sm:$0xff]
  %v164 = vld [vmem:[%s162 + $0x8] sm:$0xff]
  %v165 = vld [vmem:[%s162 + $0x10] sm:$0xff]
  %v166 = vld [vmem:[%s162 + $0x18] sm:$0xff]
  %v167 = vld [vmem:[%s162 + $0x20] sm:$0xff]
  %v168 = vld [vmem:[%s162 + $0x28] sm:$0xff]
  %v169 = vld [vmem:[%s162 + $0x30] sm:$0x11]
  %v170 = vld [vmem:[%s162 + $0x38] sm:$0x11]
  %v179 = vunpack.c.l.b16 %v163
  %v180 = vunpack.c.h.b16 %v163
  %v181 = vunpack.c.l.b16 %v164
  %v182 = vunpack.c.h.b16 %v164
  %v183 = vunpack.c.l.b16 %v165
  %v184 = vunpack.c.h.b16 %v165
  %v185 = vunpack.c.l.b16 %v166
  %v186 = vunpack.c.h.b16 %v166
  %v187 = vunpack.c.l.b16 %v167
  %v188 = vunpack.c.h.b16 %v167
  %v189 = vunpack.c.l.b16 %v168
  %v190 = vunpack.c.h.b16 %v168
  %v191 = vunpack.c.l.b16 %v169
  %v192 = vunpack.c.h.b16 %v169
  %v193 = vunpack.c.l.b16 %v170
  %v194 = vunpack.c.h.b16 %v170
  %v195 = vpack.c.b16 %v183, %v179
  %v196 = vpack.c.b16 %v184, %v180
  %v197 = vpack.c.b16 %v185, %v181
  %v198 = vpack.c.b16 %v186, %v182
  %v199 = vpack.c.b16 %v191, %v187
  %v200 = vpack.c.b16 %v192, %v188
  %v201 = vpack.c.b16 %v193, %v189
  %v202 = vpack.c.b16 %v194, %v190
  %v208 = vand.u32 %v199, %v67
  %v211 = vand.u32 %v200, %v67
  %v214 = vand.u32 %v201, %v67
  %v217 = vand.u32 %v202, %v67
  %219 = vmatprep.subr.bf16.mxu0 0
  %220 = vmatpush1.bf16.msra.mxu0 0
  %221 = vmatprep.subr.bf16.mxu0 0
  %222 = vmatpush1.bf16.msra.mxu0 0
  %223 = vmatprep.subr.bf16.mxu0 0
  %224 = vmatpush1.bf16.msra.mxu0 0
  %225 = vmatprep.subr.bf16.mxu0 0
  %226 = vmatpush1.bf16.msra.mxu0 0
  %227 = vmatprep.subr.bf16.mxu0 0
  %228 = vmatpush1.bf16.msra.mxu0 0
  %229 = vmatprep.subr.bf16.mxu0 0
  %230 = vmatpush1.bf16.msra.mxu0 0
  %231 = vmatprep.subr.bf16.mxu0 %v211
  %232 = vmatpush1.bf16.msra.mxu0 %v208
  %233 = vmatprep.subr.bf16.mxu0 %v196
  %234 = vmatpush1.bf16.msra.mxu0 %v195
  %235 = vmatprep.subr.bf16.mxu0 0
  %236 = vmatpush2.bf16.msra.mxu0 0
  %237 = vmatprep.subr.bf16.mxu0 0
  %238 = vmatpush2.bf16.msra.mxu0 0
  %239 = vmatprep.subr.bf16.mxu0 0
  %240 = vmatpush2.bf16.msra.mxu0 0
  %241 = vmatprep.subr.bf16.mxu0 0
  %242 = vmatpush2.bf16.msra.mxu0 0
  %243 = vmatprep.subr.bf16.mxu0 0
  %244 = vmatpush2.bf16.msra.mxu0 0
  %245 = vmatprep.subr.bf16.mxu0 0
  %246 = vmatpush2.bf16.msra.mxu0 0
  %247 = vmatprep.subr.bf16.mxu0 0
  %248 = vmatpush2.bf16.msra.mxu0 0
  %249 = vmatprep.subr.bf16.mxu0 0
  %250 = vmatpush2.bf16.msra.mxu0 0
  %251 = vmatprep.mubr.bf16.mxu0 0
  %252 = vmatmul.mubr.bf16.gmra.mxu0 %v62
  %v253 = vpop.f32.mrf.mxu0
  %v254 = vadd.f32 0.0, %v253
  %v255 = vpop.f32.mrf.mxu0
  %v256 = vadd.f32 0.0, %v255
  %v257 = vpop.f32.mrf.mxu0
  %v258 = vpop.f32.mrf.mxu0
  %259 = vdwg.mxu0
  %260 = vmatprep.subr.bf16.mxu0 0
  %261 = vmatpush1.bf16.msra.mxu0 0
  %262 = vmatprep.subr.bf16.mxu0 0
  %263 = vmatpush1.bf16.msra.mxu0 0
  %264 = vmatprep.subr.bf16.mxu0 0
  %265 = vmatpush1.bf16.msra.mxu0 0
  %266 = vmatprep.subr.bf16.mxu0 0
  %267 = vmatpush1.bf16.msra.mxu0 0
  %268 = vmatprep.subr.bf16.mxu0 0
  %269 = vmatpush1.bf16.msra.mxu0 0
  %270 = vmatprep.subr.bf16.mxu0 0
  %271 = vmatpush1.bf16.msra.mxu0 0
  %272 = vmatprep.subr.bf16.mxu0 %v217
  %273 = vmatpush1.bf16.msra.mxu0 %v214
  %274 = vmatprep.subr.bf16.mxu0 %v198
  %275 = vmatpush1.bf16.msra.mxu0 %v197
  %276 = vmatprep.subr.bf16.mxu0 0
  %277 = vmatpush2.bf16.msra.mxu0 0
  %278 = vmatprep.subr.bf16.mxu0 0
  %279 = vmatpush2.bf16.msra.mxu0 0
  %280 = vmatprep.subr.bf16.mxu0 0
  %281 = vmatpush2.bf16.msra.mxu0 0
  %282 = vmatprep.subr.bf16.mxu0 0
  %283 = vmatpush2.bf16.msra.mxu0 0
  %284 = vmatprep.subr.bf16.mxu0 0
  %285 = vmatpush2.bf16.msra.mxu0 0
  %286 = vmatprep.subr.bf16.mxu0 0
  %287 = vmatpush2.bf16.msra.mxu0 0
  %288 = vmatprep.subr.bf16.mxu0 0
  %289 = vmatpush2.bf16.msra.mxu0 0
  %290 = vmatprep.subr.bf16.mxu0 0
  %291 = vmatpush2.bf16.msra.mxu0 0
  %292 = vmatprep.mubr.bf16.mxu0 0
  %293 = vmatmul.mubr.bf16.gmra.mxu0 %v62
  %v294 = vpop.f32.mrf.mxu0
  %v295 = vadd.f32 0.0, %v294
  %v296 = vpop.f32.mrf.mxu0
  %v297 = vadd.f32 0.0, %v296
  %v298 = vpop.f32.mrf.mxu0
  %v299 = vpop.f32.mrf.mxu0
  %300 = vdwg.mxu0
  %v301 = vmax.f32 %v115, %v254
  %v302 = vmax.f32 %v117, %v256
  %v303 = vmax.f32 %v156, %v295
  %v304 = vmax.f32 %v158, %v297
  %s305 = scalar_lea.vmem %s0, 128
  %v306 = vld [vmem:[%s305] sm:$0xff]
  %v307 = vld [vmem:[%s305 + $0x8] sm:$0xff]
  %v308 = vld [vmem:[%s305 + $0x10] sm:$0xff]
  %v309 = vld [vmem:[%s305 + $0x18] sm:$0xff]
  %v310 = vld [vmem:[%s305 + $0x20] sm:$0xff]
  %v311 = vld [vmem:[%s305 + $0x28] sm:$0xff]
  %v312 = vld [vmem:[%s305 + $0x30] sm:$0x11]
  %v313 = vld [vmem:[%s305 + $0x38] sm:$0x11]
  %v322 = vunpack.c.l.b16 %v306
  %v323 = vunpack.c.h.b16 %v306
  %v324 = vunpack.c.l.b16 %v307
  %v325 = vunpack.c.h.b16 %v307
  %v326 = vunpack.c.l.b16 %v308
  %v327 = vunpack.c.h.b16 %v308
  %v328 = vunpack.c.l.b16 %v309
  %v329 = vunpack.c.h.b16 %v309
  %v330 = vunpack.c.l.b16 %v310
  %v331 = vunpack.c.h.b16 %v310
  %v332 = vunpack.c.l.b16 %v311
  %v333 = vunpack.c.h.b16 %v311
  %v334 = vunpack.c.l.b16 %v312
  %v335 = vunpack.c.h.b16 %v312
  %v336 = vunpack.c.l.b16 %v313
  %v337 = vunpack.c.h.b16 %v313
  %v338 = vpack.c.b16 %v326, %v322
  %v339 = vpack.c.b16 %v327, %v323
  %v340 = vpack.c.b16 %v328, %v324
  %v341 = vpack.c.b16 %v329, %v325
  %v342 = vpack.c.b16 %v334, %v330
  %v343 = vpack.c.b16 %v335, %v331
  %v344 = vpack.c.b16 %v336, %v332
  %v345 = vpack.c.b16 %v337, %v333
  %v351 = vand.u32 %v342, %v67
  %v354 = vand.u32 %v343, %v67
  %v357 = vand.u32 %v344, %v67
  %v360 = vand.u32 %v345, %v67
  %362 = vmatprep.subr.bf16.mxu0 0
  %363 = vmatpush1.bf16.msra.mxu0 0
  %364 = vmatprep.subr.bf16.mxu0 0
  %365 = vmatpush1.bf16.msra.mxu0 0
  %366 = vmatprep.subr.bf16.mxu0 0
  %367 = vmatpush1.bf16.msra.mxu0 0
  %368 = vmatprep.subr.bf16.mxu0 0
  %369 = vmatpush1.bf16.msra.mxu0 0
  %370 = vmatprep.subr.bf16.mxu0 0
  %371 = vmatpush1.bf16.msra.mxu0 0
  %372 = vmatprep.subr.bf16.mxu0 0
  %373 = vmatpush1.bf16.msra.mxu0 0
  %374 = vmatprep.subr.bf16.mxu0 %v354
  %375 = vmatpush1.bf16.msra.mxu0 %v351
  %376 = vmatprep.subr.bf16.mxu0 %v339
  %377 = vmatpush1.bf16.msra.mxu0 %v338
  %378 = vmatprep.subr.bf16.mxu0 0
  %379 = vmatpush2.bf16.msra.mxu0 0
  %380 = vmatprep.subr.bf16.mxu0 0
  %381 = vmatpush2.bf16.msra.mxu0 0
  %382 = vmatprep.subr.bf16.mxu0 0
  %383 = vmatpush2.bf16.msra.mxu0 0
  %384 = vmatprep.subr.bf16.mxu0 0
  %385 = vmatpush2.bf16.msra.mxu0 0
  %386 = vmatprep.subr.bf16.mxu0 0
  %387 = vmatpush2.bf16.msra.mxu0 0
  %388 = vmatprep.subr.bf16.mxu0 0
  %389 = vmatpush2.bf16.msra.mxu0 0
  %390 = vmatprep.subr.bf16.mxu0 0
  %391 = vmatpush2.bf16.msra.mxu0 0
  %392 = vmatprep.subr.bf16.mxu0 0
  %393 = vmatpush2.bf16.msra.mxu0 0
  %394 = vmatprep.mubr.bf16.mxu0 0
  %395 = vmatmul.mubr.bf16.gmra.mxu0 %v62
  %v396 = vpop.f32.mrf.mxu0
  %v397 = vadd.f32 0.0, %v396
  %v398 = vpop.f32.mrf.mxu0
  %v399 = vadd.f32 0.0, %v398
  %v400 = vpop.f32.mrf.mxu0
  %v401 = vpop.f32.mrf.mxu0
  %402 = vdwg.mxu0
  %403 = vmatprep.subr.bf16.mxu0 0
  %404 = vmatpush1.bf16.msra.mxu0 0
  %405 = vmatprep.subr.bf16.mxu0 0
  %406 = vmatpush1.bf16.msra.mxu0 0
  %407 = vmatprep.subr.bf16.mxu0 0
  %408 = vmatpush1.bf16.msra.mxu0 0
  %409 = vmatprep.subr.bf16.mxu0 0
  %410 = vmatpush1.bf16.msra.mxu0 0
  %411 = vmatprep.subr.bf16.mxu0 0
  %412 = vmatpush1.bf16.msra.mxu0 0
  %413 = vmatprep.subr.bf16.mxu0 0
  %414 = vmatpush1.bf16.msra.mxu0 0
  %415 = vmatprep.subr.bf16.mxu0 %v360
  %416 = vmatpush1.bf16.msra.mxu0 %v357
  %417 = vmatprep.subr.bf16.mxu0 %v341
  %418 = vmatpush1.bf16.msra.mxu0 %v340
  %419 = vmatprep.subr.bf16.mxu0 0
  %420 = vmatpush2.bf16.msra.mxu0 0
  %421 = vmatprep.subr.bf16.mxu0 0
  %422 = vmatpush2.bf16.msra.mxu0 0
  %423 = vmatprep.subr.bf16.mxu0 0
  %424 = vmatpush2.bf16.msra.mxu0 0
  %425 = vmatprep.subr.bf16.mxu0 0
  %426 = vmatpush2.bf16.msra.mxu0 0
  %427 = vmatprep.subr.bf16.mxu0 0
  %428 = vmatpush2.bf16.msra.mxu0 0
  %429 = vmatprep.subr.bf16.mxu0 0
  %430 = vmatpush2.bf16.msra.mxu0 0
  %431 = vmatprep.subr.bf16.mxu0 0
  %432 = vmatpush2.bf16.msra.mxu0 0
  %433 = vmatprep.subr.bf16.mxu0 0
  %434 = vmatpush2.bf16.msra.mxu0 0
  %435 = vmatprep.mubr.bf16.mxu0 0
  %436 = vmatmul.mubr.bf16.gmra.mxu0 %v62
  %v437 = vpop.f32.mrf.mxu0
  %v438 = vadd.f32 0.0, %v437
  %v439 = vpop.f32.mrf.mxu0
  %v440 = vadd.f32 0.0, %v439
  %v441 = vpop.f32.mrf.mxu0
  %v442 = vpop.f32.mrf.mxu0
  %443 = vdwg.mxu0
  %v444 = vmax.f32 %v301, %v397
  %v445 = vmax.f32 %v302, %v399
  %v446 = vmax.f32 %v303, %v438
  %v447 = vmax.f32 %v304, %v440
  %s448 = scalar_lea.vmem %s0, 192
  %v449 = vld [vmem:[%s448] sm:$0xff]
  %v450 = vld [vmem:[%s448 + $0x8] sm:$0xff]
  %v451 = vld [vmem:[%s448 + $0x10] sm:$0xff]
  %v452 = vld [vmem:[%s448 + $0x18] sm:$0xff]
  %v453 = vld [vmem:[%s448 + $0x20] sm:$0xff]
  %v454 = vld [vmem:[%s448 + $0x28] sm:$0xff]
  %v455 = vld [vmem:[%s448 + $0x30] sm:$0x11]
  %v456 = vld [vmem:[%s448 + $0x38] sm:$0x11]
  %v465 = vunpack.c.l.b16 %v449
  %v466 = vunpack.c.h.b16 %v449
  %v467 = vunpack.c.l.b16 %v450
  %v468 = vunpack.c.h.b16 %v450
  %v469 = vunpack.c.l.b16 %v451
  %v470 = vunpack.c.h.b16 %v451
  %v471 = vunpack.c.l.b16 %v452
  %v472 = vunpack.c.h.b16 %v452
  %v473 = vunpack.c.l.b16 %v453
  %v474 = vunpack.c.h.b16 %v453
  %v475 = vunpack.c.l.b16 %v454
  %v476 = vunpack.c.h.b16 %v454
  %v477 = vunpack.c.l.b16 %v455
  %v478 = vunpack.c.h.b16 %v455
  %v479 = vunpack.c.l.b16 %v456
  %v480 = vunpack.c.h.b16 %v456
  %v481 = vpack.c.b16 %v469, %v465
  %v482 = vpack.c.b16 %v470, %v466
  %v483 = vpack.c.b16 %v471, %v467
  %v484 = vpack.c.b16 %v472, %v468
  %v485 = vpack.c.b16 %v477, %v473
  %v486 = vpack.c.b16 %v478, %v474
  %v487 = vpack.c.b16 %v479, %v475
  %v488 = vpack.c.b16 %v480, %v476
  %v494 = vand.u32 %v485, %v67
  %v497 = vand.u32 %v486, %v67
  %v500 = vand.u32 %v487, %v67
  %v503 = vand.u32 %v488, %v67
  %505 = vmatprep.subr.bf16.mxu0 0
  %506 = vmatpush1.bf16.msra.mxu0 0
  %507 = vmatprep.subr.bf16.mxu0 0
  %508 = vmatpush1.bf16.msra.mxu0 0
  %509 = vmatprep.subr.bf16.mxu0 0
  %510 = vmatpush1.bf16.msra.mxu0 0
  %511 = vmatprep.subr.bf16.mxu0 0
  %512 = vmatpush1.bf16.msra.mxu0 0
  %513 = vmatprep.subr.bf16.mxu0 0
  %514 = vmatpush1.bf16.msra.mxu0 0
  %515 = vmatprep.subr.bf16.mxu0 0
  %516 = vmatpush1.bf16.msra.mxu0 0
  %517 = vmatprep.subr.bf16.mxu0 %v497
  %518 = vmatpush1.bf16.msra.mxu0 %v494
  %519 = vmatprep.subr.bf16.mxu0 %v482
  %520 = vmatpush1.bf16.msra.mxu0 %v481
  %521 = vmatprep.subr.bf16.mxu0 0
  %522 = vmatpush2.bf16.msra.mxu0 0
  %523 = vmatprep.subr.bf16.mxu0 0
  %524 = vmatpush2.bf16.msra.mxu0 0
  %525 = vmatprep.subr.bf16.mxu0 0
  %526 = vmatpush2.bf16.msra.mxu0 0
  %527 = vmatprep.subr.bf16.mxu0 0
  %528 = vmatpush2.bf16.msra.mxu0 0
  %529 = vmatprep.subr.bf16.mxu0 0
  %530 = vmatpush2.bf16.msra.mxu0 0
  %531 = vmatprep.subr.bf16.mxu0 0
  %532 = vmatpush2.bf16.msra.mxu0 0
  %533 = vmatprep.subr.bf16.mxu0 0
  %534 = vmatpush2.bf16.msra.mxu0 0
  %535 = vmatprep.subr.bf16.mxu0 0
  %536 = vmatpush2.bf16.msra.mxu0 0
  %537 = vmatprep.mubr.bf16.mxu0 0
  %538 = vmatmul.mubr.bf16.gmra.mxu0 %v62
  %v539 = vpop.f32.mrf.mxu0
  %v540 = vadd.f32 0.0, %v539
  %v541 = vpop.f32.mrf.mxu0
  %v542 = vadd.f32 0.0, %v541
  %v543 = vpop.f32.mrf.mxu0
  %v544 = vpop.f32.mrf.mxu0
  %545 = vdwg.mxu0
  %546 = vmatprep.subr.bf16.mxu0 0
  %547 = vmatpush1.bf16.msra.mxu0 0
  %548 = vmatprep.subr.bf16.mxu0 0
  %549 = vmatpush1.bf16.msra.mxu0 0
  %550 = vmatprep.subr.bf16.mxu0 0
  %551 = vmatpush1.bf16.msra.mxu0 0
  %552 = vmatprep.subr.bf16.mxu0 0
  %553 = vmatpush1.bf16.msra.mxu0 0
  %554 = vmatprep.subr.bf16.mxu0 0
  %555 = vmatpush1.bf16.msra.mxu0 0
  %556 = vmatprep.subr.bf16.mxu0 0
  %557 = vmatpush1.bf16.msra.mxu0 0
  %558 = vmatprep.subr.bf16.mxu0 %v503
  %559 = vmatpush1.bf16.msra.mxu0 %v500
  %560 = vmatprep.subr.bf16.mxu0 %v484
  %561 = vmatpush1.bf16.msra.mxu0 %v483
  %562 = vmatprep.subr.bf16.mxu0 0
  %563 = vmatpush2.bf16.msra.mxu0 0
  %564 = vmatprep.subr.bf16.mxu0 0
  %565 = vmatpush2.bf16.msra.mxu0 0
  %566 = vmatprep.subr.bf16.mxu0 0
  %567 = vmatpush2.bf16.msra.mxu0 0
  %568 = vmatprep.subr.bf16.mxu0 0
  %569 = vmatpush2.bf16.msra.mxu0 0
  %570 = vmatprep.subr.bf16.mxu0 0
  %571 = vmatpush2.bf16.msra.mxu0 0
  %572 = vmatprep.subr.bf16.mxu0 0
  %573 = vmatpush2.bf16.msra.mxu0 0
  %574 = vmatprep.subr.bf16.mxu0 0
  %575 = vmatpush2.bf16.msra.mxu0 0
  %576 = vmatprep.subr.bf16.mxu0 0
  %577 = vmatpush2.bf16.msra.mxu0 0
  %578 = vmatprep.mubr.bf16.mxu0 0
  %579 = vmatmul.mubr.bf16.gmra.mxu0 %v62
  %v580 = vpop.f32.mrf.mxu0
  %v581 = vadd.f32 0.0, %v580
  %v582 = vpop.f32.mrf.mxu0
  %v583 = vadd.f32 0.0, %v582
  %v584 = vpop.f32.mrf.mxu0
  %v585 = vpop.f32.mrf.mxu0
  %586 = vdwg.mxu0
  %v587 = vmax.f32 %v444, %v540
  %v588 = vmax.f32 %v445, %v542
  %v589 = vmax.f32 %v446, %v581
  %v590 = vmax.f32 %v447, %v583
  %v591 = vld [vmem:[%s2] sm:$0x3f]
  %593 = vset.pattern.permute.xlu0 0
  %594 = vperm.xlu0 %593, %v591
  %v595 = vpop.permute.xlu0 %594
  %v597 = vadd.f32 %v587, %v595
  %v598 = vadd.f32 %v588, %v595
  %v599 = vadd.f32 %v589, %v595
  %v600 = vadd.f32 %v590, %v595
  %v601 = vmax.f32 %v597, 0.0
  %v602 = vmax.f32 %v598, 0.0
  %v603 = vmax.f32 %v599, 0.0
  %v604 = vmax.f32 %v600, 0.0
  %605 = vst [vmem:[%s3] sm:$0x3f] %v601
  %606 = vst [vmem:[%s3 + $0x8] sm:$0x3f] %v602
  %607 = vst [vmem:[%s3 + $0x10] sm:$0x3f] %v603
  %608 = vst [vmem:[%s3 + $0x18] sm:$0x3f] %v604
  // Predicated region
  $region14: #{net_original_forward.3} parent=0 // pred_check
    _
  $region15: #{net_original_forward.3} parent=0 // pred_check_branch
    %610 = sbr.rel (0) target = $region17
  $region16: #{net_original_forward.3} parent=0 // pred_region
    _
  $region17: #{net_original_forward.3} parent=0 // pred_fallthru
    _
  // Predicated region
  $region18: #{net_original_forward.3} parent=0 // pred_check
    _
  $region19: #{net_original_forward.3} parent=0 // pred_check_branch
    %612 = sbr.rel (0) target = $region21
  $region20: #{net_original_forward.3} parent=0 // pred_region
    _
  $region21: #{net_original_forward.3} parent=0 // pred_fallthru
    _

// kernel: net_original_forward.4
$region0: #{net_original_forward.4}
  #allocation0 [shape = 'u32[]', space=smem, size = 0x4, offset = 0x4, fixed_abs, tag = 'smem constant byte address 0x4 - core index']
  #allocation1 [shape = 'u32[144,128]{1,0:T(1,128)}', space=vmem, size = 0x12000, scoped, tag = 'internal scratch']
  %s0 = inlined_call_operand.vmem [shape: bf16[4,150,512], index: 0, kind: input, shape index: {}]
  %s1 = inlined_call_operand.vmem [shape: bf16[16,150], index: 1, kind: input, shape index: {}]
  %s2 = inlined_call_operand.vmem [shape: f32[16,1], index: 2, kind: input, shape index: {}]
  %s3 = inlined_call_operand.vmem [shape: f32[16,512], index: 3, kind: output, shape index: {}]
  %s4 = sld [smem:[#allocation0]]
  $region22: #{net_original_forward.4} parent=0
    _
  %s6 = ssub.s32 1, %s4
  %s7 = scalar_select 0, %s6, %s4
  // Predicated region
  $region2: #{net_original_forward.4} parent=0 // pred_check
    _
  $region3: #{net_original_forward.4} parent=0 // pred_check_branch
    %9 = sbr.rel (0) target = $region5
  $region4: #{net_original_forward.4} parent=0 // pred_region
    _
  $region5: #{net_original_forward.4} parent=0 // pred_fallthru
    _
  // Predicated region
  $region6: #{net_original_forward.4} parent=0 // pred_check
    _
  $region7: #{net_original_forward.4} parent=0 // pred_check_branch
    %11 = sbr.rel (0) target = $region9
  $region8: #{net_original_forward.4} parent=0 // pred_region
    _
  $region9: #{net_original_forward.4} parent=0 // pred_fallthru
    _
  // Predicated region
  $region10: #{net_original_forward.4} parent=0 // pred_check
    _
  $region11: #{net_original_forward.4} parent=0 // pred_check_branch
    %13 = sbr.rel (0) target = $region13
  $region12: #{net_original_forward.4} parent=0 // pred_region
    _
  $region13: #{net_original_forward.4} parent=0 // pred_fallthru
    _
  %v15 = vld [vmem:[%s1] sm:$0xff]
  %v16 = vld [vmem:[%s1 + $0x8] sm:$0xff]
  %v17 = vld [vmem:[%s0] sm:$0xff]
  %v18 = vld [vmem:[%s0 + $0x8] sm:$0xff]
  %v19 = vld [vmem:[%s0 + $0x10] sm:$0xff]
  %v20 = vld [vmem:[%s0 + $0x18] sm:$0xff]
  %v21 = vld [vmem:[%s0 + $0x20] sm:$0xff]
  %v22 = vld [vmem:[%s0 + $0x28] sm:$0xff]
  %v23 = vld [vmem:[%s0 + $0x30] sm:$0xff]
  %v24 = vld [vmem:[%s0 + $0x38] sm:$0xff]
  %v25 = vld [vmem:[%s0 + $0x40] sm:$0xff]
  %v26 = vld [vmem:[%s0 + $0x48] sm:$0xff]
  %v27 = vld [vmem:[%s0 + $0x50] sm:$0xff]
  %v28 = vld [vmem:[%s0 + $0x58] sm:$0xff]
  %v29 = vld [vmem:[%s0 + $0x60] sm:$0xff]
  %v30 = vld [vmem:[%s0 + $0x68] sm:$0xff]
  %v31 = vld [vmem:[%s0 + $0x70] sm:$0xff]
  %v32 = vld [vmem:[%s0 + $0x78] sm:$0xff]
  %v33 = vld [vmem:[%s0 + $0x80] sm:$0xff]
  %v34 = vld [vmem:[%s0 + $0x88] sm:$0xff]
  %v35 = vld [vmem:[%s0 + $0x90] sm:$0xff]
  %v36 = vld [vmem:[%s0 + $0x98] sm:$0xff]
  %v37 = vld [vmem:[%s0 + $0xa0] sm:$0xff]
  %v38 = vld [vmem:[%s0 + $0xa8] sm:$0xff]
  %v39 = vld [vmem:[%s0 + $0xb0] sm:$0xff]
  %v40 = vld [vmem:[%s0 + $0xb8] sm:$0xff]
  %v41 = vld [vmem:[%s0 + $0xc0] sm:$0xff]
  %v42 = vld [vmem:[%s0 + $0xc8] sm:$0xff]
  %v43 = vld [vmem:[%s0 + $0xd0] sm:$0xff]
  %v44 = vld [vmem:[%s0 + $0xd8] sm:$0xff]
  %v45 = vld [vmem:[%s0 + $0xe0] sm:$0xff]
  %v46 = vld [vmem:[%s0 + $0xe8] sm:$0xff]
  %v47 = vld [vmem:[%s0 + $0xf0] sm:$0xff]
  %v48 = vld [vmem:[%s0 + $0xf8] sm:$0xff]
  %v49 = vld [vmem:[%s0 + $0x100] sm:$0xff]
  %v50 = vld [vmem:[%s0 + $0x108] sm:$0xff]
  %v51 = vld [vmem:[%s0 + $0x110] sm:$0xff]
  %v52 = vld [vmem:[%s0 + $0x118] sm:$0xff]
  %v53 = vld [vmem:[%s0 + $0x120] sm:$0x77]
  %v54 = vld [vmem:[%s0 + $0x128] sm:$0x77]
  %v57 = vunpack.c.l.b16 %v15
  %v58 = vunpack.c.h.b16 %v15
  %v59 = vunpack.c.l.b16 %v16
  %v60 = vunpack.c.h.b16 %v16
  %v61 = vpack.c.b16 %v59, %v57
  %v62 = vpack.c.b16 %v60, %v58
  %v102 = vunpack.c.l.b16 %v17
  %v103 = vunpack.c.h.b16 %v17
  %v104 = vunpack.c.l.b16 %v18
  %v105 = vunpack.c.h.b16 %v18
  %v106 = vunpack.c.l.b16 %v19
  %v107 = vunpack.c.h.b16 %v19
  %v108 = vunpack.c.l.b16 %v20
  %v109 = vunpack.c.h.b16 %v20
  %v110 = vunpack.c.l.b16 %v21
  %v111 = vunpack.c.h.b16 %v21
  %v112 = vunpack.c.l.b16 %v22
  %v113 = vunpack.c.h.b16 %v22
  %v114 = vunpack.c.l.b16 %v23
  %v115 = vunpack.c.h.b16 %v23
  %v116 = vunpack.c.l.b16 %v24
  %v117 = vunpack.c.h.b16 %v24
  %v118 = vunpack.c.l.b16 %v25
  %v119 = vunpack.c.h.b16 %v25
  %v120 = vunpack.c.l.b16 %v26
  %v121 = vunpack.c.h.b16 %v26
  %v122 = vunpack.c.l.b16 %v27
  %v123 = vunpack.c.h.b16 %v27
  %v124 = vunpack.c.l.b16 %v28
  %v125 = vunpack.c.h.b16 %v28
  %v126 = vunpack.c.l.b16 %v29
  %v127 = vunpack.c.h.b16 %v29
  %v128 = vunpack.c.l.b16 %v30
  %v129 = vunpack.c.h.b16 %v30
  %v130 = vunpack.c.l.b16 %v31
  %v131 = vunpack.c.h.b16 %v31
  %v132 = vunpack.c.l.b16 %v32
  %v133 = vunpack.c.h.b16 %v32
  %v134 = vunpack.c.l.b16 %v33
  %v135 = vunpack.c.h.b16 %v33
  %v136 = vunpack.c.l.b16 %v34
  %v137 = vunpack.c.h.b16 %v34
  %v138 = vunpack.c.l.b16 %v35
  %v139 = vunpack.c.h.b16 %v35
  %v140 = vunpack.c.l.b16 %v36
  %v141 = vunpack.c.h.b16 %v36
  %v142 = vunpack.c.l.b16 %v37
  %v143 = vunpack.c.h.b16 %v37
  %v144 = vunpack.c.l.b16 %v38
  %v145 = vunpack.c.h.b16 %v38
  %v146 = vunpack.c.l.b16 %v39
  %v147 = vunpack.c.h.b16 %v39
  %v148 = vunpack.c.l.b16 %v40
  %v149 = vunpack.c.h.b16 %v40
  %v150 = vunpack.c.l.b16 %v41
  %v151 = vunpack.c.h.b16 %v41
  %v152 = vunpack.c.l.b16 %v42
  %v153 = vunpack.c.h.b16 %v42
  %v154 = vunpack.c.l.b16 %v43
  %v155 = vunpack.c.h.b16 %v43
  %v156 = vunpack.c.l.b16 %v44
  %v157 = vunpack.c.h.b16 %v44
  %v158 = vunpack.c.l.b16 %v45
  %v159 = vunpack.c.h.b16 %v45
  %v160 = vunpack.c.l.b16 %v46
  %v161 = vunpack.c.h.b16 %v46
  %v162 = vunpack.c.l.b16 %v47
  %v163 = vunpack.c.h.b16 %v47
  %v164 = vunpack.c.l.b16 %v48
  %v165 = vunpack.c.h.b16 %v48
  %v166 = vunpack.c.l.b16 %v49
  %v167 = vunpack.c.h.b16 %v49
  %v168 = vunpack.c.l.b16 %v50
  %v169 = vunpack.c.h.b16 %v50
  %v170 = vunpack.c.l.b16 %v51
  %v171 = vunpack.c.h.b16 %v51
  %v172 = vunpack.c.l.b16 %v52
  %v173 = vunpack.c.h.b16 %v52
  %v174 = vunpack.c.l.b16 %v53
  %v175 = vunpack.c.h.b16 %v53
  %v176 = vunpack.c.l.b16 %v54
  %v177 = vunpack.c.h.b16 %v54
  %v178 = vpack.c.b16 %v106, %v102
  %v179 = vpack.c.b16 %v107, %v103
  %v180 = vpack.c.b16 %v108, %v104
  %v181 = vpack.c.b16 %v109, %v105
  %v182 = vpack.c.b16 %v114, %v110
  %v183 = vpack.c.b16 %v115, %v111
  %v184 = vpack.c.b16 %v116, %v112
  %v185 = vpack.c.b16 %v117, %v113
  %v186 = vpack.c.b16 %v122, %v118
  %v187 = vpack.c.b16 %v123, %v119
  %v188 = vpack.c.b16 %v124, %v120
  %v189 = vpack.c.b16 %v125, %v121
  %v190 = vpack.c.b16 %v130, %v126
  %v191 = vpack.c.b16 %v131, %v127
  %v192 = vpack.c.b16 %v132, %v128
  %v193 = vpack.c.b16 %v133, %v129
  %v194 = vpack.c.b16 %v138, %v134
  %v195 = vpack.c.b16 %v139, %v135
  %v196 = vpack.c.b16 %v140, %v136
  %v197 = vpack.c.b16 %v141, %v137
  %v198 = vpack.c.b16 %v146, %v142
  %v199 = vpack.c.b16 %v147, %v143
  %v200 = vpack.c.b16 %v148, %v144
  %v201 = vpack.c.b16 %v149, %v145
  %v202 = vpack.c.b16 %v154, %v150
  %v203 = vpack.c.b16 %v155, %v151
  %v204 = vpack.c.b16 %v156, %v152
  %v205 = vpack.c.b16 %v157, %v153
  %v206 = vpack.c.b16 %v162, %v158
  %v207 = vpack.c.b16 %v163, %v159
  %v208 = vpack.c.b16 %v164, %v160
  %v209 = vpack.c.b16 %v165, %v161
  %v210 = vpack.c.b16 %v170, %v166
  %v211 = vpack.c.b16 %v171, %v167
  %v212 = vpack.c.b16 %v172, %v168
  %v213 = vpack.c.b16 %v173, %v169
  %v214 = vpack.c.b16 %v174, %v174
  %v215 = vpack.c.b16 %v175, %v175
  %v216 = vpack.c.b16 %v176, %v176
  %v217 = vpack.c.b16 %v177, %v177
  %vm254 = vcmask 179200
  %v256 = vsel %vm254, %v62, 0
  %vm258 = vcmask 1042432
  %v260 = vsel %vm258, %v214, 0
  %v263 = vsel %vm258, %v215, 0
  %v266 = vsel %vm258, %v216, 0
  %v269 = vsel %vm258, %v217, 0
  %271 = vmatprep.subr.bf16.mxu0 %v207
  %272 = vmatpush1.bf16.msra.mxu0 %v206
  %273 = vmatprep.subr.bf16.mxu0 %v203
  %274 = vmatpush1.bf16.msra.mxu0 %v202
  %275 = vmatprep.subr.bf16.mxu0 %v199
  %276 = vmatpush1.bf16.msra.mxu0 %v198
  %277 = vmatprep.subr.bf16.mxu0 %v195
  %278 = vmatpush1.bf16.msra.mxu0 %v194
  %279 = vmatprep.subr.bf16.mxu0 %v191
  %280 = vmatpush1.bf16.msra.mxu0 %v190
  %281 = vmatprep.subr.bf16.mxu0 %v187
  %282 = vmatpush1.bf16.msra.mxu0 %v186
  %283 = vmatprep.subr.bf16.mxu0 %v183
  %284 = vmatpush1.bf16.msra.mxu0 %v182
  %285 = vmatprep.subr.bf16.mxu0 %v179
  %286 = vmatpush1.bf16.msra.mxu0 %v178
  %287 = vmatprep.subr.bf16.mxu0 0
  %288 = vmatpush2.bf16.msra.mxu0 0
  %289 = vmatprep.subr.bf16.mxu0 0
  %290 = vmatpush2.bf16.msra.mxu0 0
  %291 = vmatprep.subr.bf16.mxu0 0
  %292 = vmatpush2.bf16.msra.mxu0 0
  %293 = vmatprep.subr.bf16.mxu0 0
  %294 = vmatpush2.bf16.msra.mxu0 0
  %295 = vmatprep.subr.bf16.mxu0 0
  %296 = vmatpush2.bf16.msra.mxu0 0
  %297 = vmatprep.subr.bf16.mxu0 0
  %298 = vmatpush2.bf16.msra.mxu0 0
  %299 = vmatprep.subr.bf16.mxu0 %v263
  %300 = vmatpush2.bf16.msra.mxu0 %v260
  %301 = vmatprep.subr.bf16.mxu0 %v211
  %302 = vmatpush2.bf16.msra.mxu0 %v210
  %303 = vmatprep.mubr.bf16.mxu0 %v256
  %304 = vmatmul.mubr.bf16.gmra.mxu0 %v61
  %v305 = vpop.f32.mrf.mxu0
  %v306 = vadd.f32 0.0, %v305
  %v307 = vpop.f32.mrf.mxu0
  %v308 = vadd.f32 0.0, %v307
  %v309 = vpop.f32.mrf.mxu0
  %v310 = vadd.f32 0.0, %v309
  %v311 = vpop.f32.mrf.mxu0
  %v312 = vadd.f32 0.0, %v311
  %313 = vdwg.mxu0
  %314 = vmatprep.subr.bf16.mxu0 %v209
  %315 = vmatpush1.bf16.msra.mxu0 %v208
  %316 = vmatprep.subr.bf16.mxu0 %v205
  %317 = vmatpush1.bf16.msra.mxu0 %v204
  %318 = vmatprep.subr.bf16.mxu0 %v201
  %319 = vmatpush1.bf16.msra.mxu0 %v200
  %320 = vmatprep.subr.bf16.mxu0 %v197
  %321 = vmatpush1.bf16.msra.mxu0 %v196
  %322 = vmatprep.subr.bf16.mxu0 %v193
  %323 = vmatpush1.bf16.msra.mxu0 %v192
  %324 = vmatprep.subr.bf16.mxu0 %v189
  %325 = vmatpush1.bf16.msra.mxu0 %v188
  %326 = vmatprep.subr.bf16.mxu0 %v185
  %327 = vmatpush1.bf16.msra.mxu0 %v184
  %328 = vmatprep.subr.bf16.mxu0 %v181
  %329 = vmatpush1.bf16.msra.mxu0 %v180
  %330 = vmatprep.subr.bf16.mxu0 0
  %331 = vmatpush2.bf16.msra.mxu0 0
  %332 = vmatprep.subr.bf16.mxu0 0
  %333 = vmatpush2.bf16.msra.mxu0 0
  %334 = vmatprep.subr.bf16.mxu0 0
  %335 = vmatpush2.bf16.msra.mxu0 0
  %336 = vmatprep.subr.bf16.mxu0 0
  %337 = vmatpush2.bf16.msra.mxu0 0
  %338 = vmatprep.subr.bf16.mxu0 0
  %339 = vmatpush2.bf16.msra.mxu0 0
  %340 = vmatprep.subr.bf16.mxu0 0
  %341 = vmatpush2.bf16.msra.mxu0 0
  %342 = vmatprep.subr.bf16.mxu0 %v269
  %343 = vmatpush2.bf16.msra.mxu0 %v266
  %344 = vmatprep.subr.bf16.mxu0 %v213
  %345 = vmatpush2.bf16.msra.mxu0 %v212
  %346 = vmatprep.mubr.bf16.mxu0 %v256
  %347 = vmatmul.mubr.bf16.gmra.mxu0 %v61
  %v348 = vpop.f32.mrf.mxu0
  %v349 = vadd.f32 0.0, %v348
  %v350 = vpop.f32.mrf.mxu0
  %v351 = vadd.f32 0.0, %v350
  %v352 = vpop.f32.mrf.mxu0
  %v353 = vadd.f32 0.0, %v352
  %v354 = vpop.f32.mrf.mxu0
  %v355 = vadd.f32 0.0, %v354
  %356 = vdwg.mxu0
  %s357 = scalar_lea.vmem %s0, 304
  %v358 = vld [vmem:[%s357] sm:$0xff]
  %v359 = vld [vmem:[%s357 + $0x8] sm:$0xff]
  %v360 = vld [vmem:[%s357 + $0x10] sm:$0xff]
  %v361 = vld [vmem:[%s357 + $0x18] sm:$0xff]
  %v362 = vld [vmem:[%s357 + $0x20] sm:$0xff]
  %v363 = vld [vmem:[%s357 + $0x28] sm:$0xff]
  %v364 = vld [vmem:[%s357 + $0x30] sm:$0xff]
  %v365 = vld [vmem:[%s357 + $0x38] sm:$0xff]
  %v366 = vld [vmem:[%s357 + $0x40] sm:$0xff]
  %v367 = vld [vmem:[%s357 + $0x48] sm:$0xff]
  %v368 = vld [vmem:[%s357 + $0x50] sm:$0xff]
  %v369 = vld [vmem:[%s357 + $0x58] sm:$0xff]
  %v370 = vld [vmem:[%s357 + $0x60] sm:$0xff]
  %v371 = vld [vmem:[%s357 + $0x68] sm:$0xff]
  %v372 = vld [vmem:[%s357 + $0x70] sm:$0xff]
  %v373 = vld [vmem:[%s357 + $0x78] sm:$0xff]
  %v374 = vld [vmem:[%s357 + $0x80] sm:$0xff]
  %v375 = vld [vmem:[%s357 + $0x88] sm:$0xff]
  %v376 = vld [vmem:[%s357 + $0x90] sm:$0xff]
  %v377 = vld [vmem:[%s357 + $0x98] sm:$0xff]
  %v378 = vld [vmem:[%s357 + $0xa0] sm:$0xff]
  %v379 = vld [vmem:[%s357 + $0xa8] sm:$0xff]
  %v380 = vld [vmem:[%s357 + $0xb0] sm:$0xff]
  %v381 = vld [vmem:[%s357 + $0xb8] sm:$0xff]
  %v382 = vld [vmem:[%s357 + $0xc0] sm:$0xff]
  %v383 = vld [vmem:[%s357 + $0xc8] sm:$0xff]
  %v384 = vld [vmem:[%s357 + $0xd0] sm:$0xff]
  %v385 = vld [vmem:[%s357 + $0xd8] sm:$0xff]
  %v386 = vld [vmem:[%s357 + $0xe0] sm:$0xff]
  %v387 = vld [vmem:[%s357 + $0xe8] sm:$0xff]
  %v388 = vld [vmem:[%s357 + $0xf0] sm:$0xff]
  %v389 = vld [vmem:[%s357 + $0xf8] sm:$0xff]
  %v390 = vld [vmem:[%s357 + $0x100] sm:$0xff]
  %v391 = vld [vmem:[%s357 + $0x108] sm:$0xff]
  %v392 = vld [vmem:[%s357 + $0x110] sm:$0xff]
  %v393 = vld [vmem:[%s357 + $0x118] sm:$0xff]
  %v394 = vld [vmem:[%s357 + $0x120] sm:$0x77]
  %v395 = vld [vmem:[%s357 + $0x128] sm:$0x77]
  %v434 = vunpack.c.l.b16 %v358
  %v435 = vunpack.c.h.b16 %v358
  %v436 = vunpack.c.l.b16 %v359
  %v437 = vunpack.c.h.b16 %v359
  %v438 = vunpack.c.l.b16 %v360
  %v439 = vunpack.c.h.b16 %v360
  %v440 = vunpack.c.l.b16 %v361
  %v441 = vunpack.c.h.b16 %v361
  %v442 = vunpack.c.l.b16 %v362
  %v443 = vunpack.c.h.b16 %v362
  %v444 = vunpack.c.l.b16 %v363
  %v445 = vunpack.c.h.b16 %v363
  %v446 = vunpack.c.l.b16 %v364
  %v447 = vunpack.c.h.b16 %v364
  %v448 = vunpack.c.l.b16 %v365
  %v449 = vunpack.c.h.b16 %v365
  %v450 = vunpack.c.l.b16 %v366
  %v451 = vunpack.c.h.b16 %v366
  %v452 = vunpack.c.l.b16 %v367
  %v453 = vunpack.c.h.b16 %v367
  %v454 = vunpack.c.l.b16 %v368
  %v455 = vunpack.c.h.b16 %v368
  %v456 = vunpack.c.l.b16 %v369
  %v457 = vunpack.c.h.b16 %v369
  %v458 = vunpack.c.l.b16 %v370
  %v459 = vunpack.c.h.b16 %v370
  %v460 = vunpack.c.l.b16 %v371
  %v461 = vunpack.c.h.b16 %v371
  %v462 = vunpack.c.l.b16 %v372
  %v463 = vunpack.c.h.b16 %v372
  %v464 = vunpack.c.l.b16 %v373
  %v465 = vunpack.c.h.b16 %v373
  %v466 = vunpack.c.l.b16 %v374
  %v467 = vunpack.c.h.b16 %v374
  %v468 = vunpack.c.l.b16 %v375
  %v469 = vunpack.c.h.b16 %v375
  %v470 = vunpack.c.l.b16 %v376
  %v471 = vunpack.c.h.b16 %v376
  %v472 = vunpack.c.l.b16 %v377
  %v473 = vunpack.c.h.b16 %v377
  %v474 = vunpack.c.l.b16 %v378
  %v475 = vunpack.c.h.b16 %v378
  %v476 = vunpack.c.l.b16 %v379
  %v477 = vunpack.c.h.b16 %v379
  %v478 = vunpack.c.l.b16 %v380
  %v479 = vunpack.c.h.b16 %v380
  %v480 = vunpack.c.l.b16 %v381
  %v481 = vunpack.c.h.b16 %v381
  %v482 = vunpack.c.l.b16 %v382
  %v483 = vunpack.c.h.b16 %v382
  %v484 = vunpack.c.l.b16 %v383
  %v485 = vunpack.c.h.b16 %v383
  %v486 = vunpack.c.l.b16 %v384
  %v487 = vunpack.c.h.b16 %v384
  %v488 = vunpack.c.l.b16 %v385
  %v489 = vunpack.c.h.b16 %v385
  %v490 = vunpack.c.l.b16 %v386
  %v491 = vunpack.c.h.b16 %v386
  %v492 = vunpack.c.l.b16 %v387
  %v493 = vunpack.c.h.b16 %v387
  %v494 = vunpack.c.l.b16 %v388
  %v495 = vunpack.c.h.b16 %v388
  %v496 = vunpack.c.l.b16 %v389
  %v497 = vunpack.c.h.b16 %v389
  %v498 = vunpack.c.l.b16 %v390
  %v499 = vunpack.c.h.b16 %v390
  %v500 = vunpack.c.l.b16 %v391
  %v501 = vunpack.c.h.b16 %v391
  %v502 = vunpack.c.l.b16 %v392
  %v503 = vunpack.c.h.b16 %v392
  %v504 = vunpack.c.l.b16 %v393
  %v505 = vunpack.c.h.b16 %v393
  %v506 = vunpack.c.l.b16 %v394
  %v507 = vunpack.c.h.b16 %v394
  %v508 = vunpack.c.l.b16 %v395
  %v509 = vunpack.c.h.b16 %v395
  %v510 = vpack.c.b16 %v438, %v434
  %v511 = vpack.c.b16 %v439, %v435
  %v512 = vpack.c.b16 %v440, %v436
  %v513 = vpack.c.b16 %v441, %v437
  %v514 = vpack.c.b16 %v446, %v442
  %v515 = vpack.c.b16 %v447, %v443
  %v516 = vpack.c.b16 %v448, %v444
  %v517 = vpack.c.b16 %v449, %v445
  %v518 = vpack.c.b16 %v454, %v450
  %v519 = vpack.c.b16 %v455, %v451
  %v520 = vpack.c.b16 %v456, %v452
  %v521 = vpack.c.b16 %v457, %v453
  %v522 = vpack.c.b16 %v462, %v458
  %v523 = vpack.c.b16 %v463, %v459
  %v524 = vpack.c.b16 %v464, %v460
  %v525 = vpack.c.b16 %v465, %v461
  %v526 = vpack.c.b16 %v470, %v466
  %v527 = vpack.c.b16 %v471, %v467
  %v528 = vpack.c.b16 %v472, %v468
  %v529 = vpack.c.b16 %v473, %v469
  %v530 = vpack.c.b16 %v478, %v474
  %v531 = vpack.c.b16 %v479, %v475
  %v532 = vpack.c.b16 %v480, %v476
  %v533 = vpack.c.b16 %v481, %v477
  %v534 = vpack.c.b16 %v486, %v482
  %v535 = vpack.c.b16 %v487, %v483
  %v536 = vpack.c.b16 %v488, %v484
  %v537 = vpack.c.b16 %v489, %v485
  %v538 = vpack.c.b16 %v494, %v490
  %v539 = vpack.c.b16 %v495, %v491
  %v540 = vpack.c.b16 %v496, %v492
  %v541 = vpack.c.b16 %v497, %v493
  %v542 = vpack.c.b16 %v502, %v498
  %v543 = vpack.c.b16 %v503, %v499
  %v544 = vpack.c.b16 %v504, %v500
  %v545 = vpack.c.b16 %v505, %v501
  %v546 = vpack.c.b16 %v506, %v506
  %v547 = vpack.c.b16 %v507, %v507
  %v548 = vpack.c.b16 %v508, %v508
  %v549 = vpack.c.b16 %v509, %v509
  %v587 = vsel %vm258, %v546, 0
  %v590 = vsel %vm258, %v547, 0
  %v593 = vsel %vm258, %v548, 0
  %v596 = vsel %vm258, %v549, 0
  %598 = vmatprep.subr.bf16.mxu0 %v539
  %599 = vmatpush1.bf16.msra.mxu0 %v538
  %600 = vmatprep.subr.bf16.mxu0 %v535
  %601 = vmatpush1.bf16.msra.mxu0 %v534
  %602 = vmatprep.subr.bf16.mxu0 %v531
  %603 = vmatpush1.bf16.msra.mxu0 %v530
  %604 = vmatprep.subr.bf16.mxu0 %v527
  %605 = vmatpush1.bf16.msra.mxu0 %v526
  %606 = vmatprep.subr.bf16.mxu0 %v523
  %607 = vmatpush1.bf16.msra.mxu0 %v522
  %608 = vmatprep.subr.bf16.mxu0 %v519
  %609 = vmatpush1.bf16.msra.mxu0 %v518
  %610 = vmatprep.subr.bf16.mxu0 %v515
  %611 = vmatpush1.bf16.msra.mxu0 %v514
  %612 = vmatprep.subr.bf16.mxu0 %v511
  %613 = vmatpush1.bf16.msra.mxu0 %v510
  %614 = vmatprep.subr.bf16.mxu0 0
  %615 = vmatpush2.bf16.msra.mxu0 0
  %616 = vmatprep.subr.bf16.mxu0 0
  %617 = vmatpush2.bf16.msra.mxu0 0
  %618 = vmatprep.subr.bf16.mxu0 0
  %619 = vmatpush2.bf16.msra.mxu0 0
  %620 = vmatprep.subr.bf16.mxu0 0
  %621 = vmatpush2.bf16.msra.mxu0 0
  %622 = vmatprep.subr.bf16.mxu0 0
  %623 = vmatpush2.bf16.msra.mxu0 0
  %624 = vmatprep.subr.bf16.mxu0 0
  %625 = vmatpush2.bf16.msra.mxu0 0
  %626 = vmatprep.subr.bf16.mxu0 %v590
  %627 = vmatpush2.bf16.msra.mxu0 %v587
  %628 = vmatprep.subr.bf16.mxu0 %v543
  %629 = vmatpush2.bf16.msra.mxu0 %v542
  %630 = vmatprep.mubr.bf16.mxu0 %v256
  %631 = vmatmul.mubr.bf16.gmra.mxu0 %v61
  %v632 = vpop.f32.mrf.mxu0
  %v633 = vadd.f32 0.0, %v632
  %v634 = vpop.f32.mrf.mxu0
  %v635 = vadd.f32 0.0, %v634
  %v636 = vpop.f32.mrf.mxu0
  %v637 = vadd.f32 0.0, %v636
  %v638 = vpop.f32.mrf.mxu0
  %v639 = vadd.f32 0.0, %v638
  %640 = vdwg.mxu0
  %641 = vmatprep.subr.bf16.mxu0 %v541
  %642 = vmatpush1.bf16.msra.mxu0 %v540
  %643 = vmatprep.subr.bf16.mxu0 %v537
  %644 = vmatpush1.bf16.msra.mxu0 %v536
  %645 = vmatprep.subr.bf16.mxu0 %v533
  %646 = vmatpush1.bf16.msra.mxu0 %v532
  %647 = vmatprep.subr.bf16.mxu0 %v529
  %648 = vmatpush1.bf16.msra.mxu0 %v528
  %649 = vmatprep.subr.bf16.mxu0 %v525
  %650 = vmatpush1.bf16.msra.mxu0 %v524
  %651 = vmatprep.subr.bf16.mxu0 %v521
  %652 = vmatpush1.bf16.msra.mxu0 %v520
  %653 = vmatprep.subr.bf16.mxu0 %v517
  %654 = vmatpush1.bf16.msra.mxu0 %v516
  %655 = vmatprep.subr.bf16.mxu0 %v513
  %656 = vmatpush1.bf16.msra.mxu0 %v512
  %657 = vmatprep.subr.bf16.mxu0 0
  %658 = vmatpush2.bf16.msra.mxu0 0
  %659 = vmatprep.subr.bf16.mxu0 0
  %660 = vmatpush2.bf16.msra.mxu0 0
  %661 = vmatprep.subr.bf16.mxu0 0
  %662 = vmatpush2.bf16.msra.mxu0 0
  %663 = vmatprep.subr.bf16.mxu0 0
  %664 = vmatpush2.bf16.msra.mxu0 0
  %665 = vmatprep.subr.bf16.mxu0 0
  %666 = vmatpush2.bf16.msra.mxu0 0
  %667 = vmatprep.subr.bf16.mxu0 0
  %668 = vmatpush2.bf16.msra.mxu0 0
  %669 = vmatprep.subr.bf16.mxu0 %v596
  %670 = vmatpush2.bf16.msra.mxu0 %v593
  %671 = vmatprep.subr.bf16.mxu0 %v545
  %672 = vmatpush2.bf16.msra.mxu0 %v544
  %673 = vmatprep.mubr.bf16.mxu0 %v256
  %674 = vmatmul.mubr.bf16.gmra.mxu0 %v61
  %v675 = vpop.f32.mrf.mxu0
  %v676 = vadd.f32 0.0, %v675
  %v677 = vpop.f32.mrf.mxu0
  %v678 = vadd.f32 0.0, %v677
  %v679 = vpop.f32.mrf.mxu0
  %v680 = vadd.f32 0.0, %v679
  %v681 = vpop.f32.mrf.mxu0
  %v682 = vadd.f32 0.0, %v681
  %683 = vdwg.mxu0
  %v684 = vmax.f32 %v306, %v633
  %v685 = vmax.f32 %v308, %v635
  %v686 = vmax.f32 %v349, %v676
  %v687 = vmax.f32 %v351, %v678
  %v688 = vmax.f32 %v310, %v637
  %v689 = vmax.f32 %v312, %v639
  %v690 = vmax.f32 %v353, %v680
  %v691 = vmax.f32 %v355, %v682
  %s692 = scalar_lea.vmem %s0, 608
  %v693 = vld [vmem:[%s692] sm:$0xff]
  %v694 = vld [vmem:[%s692 + $0x8] sm:$0xff]
  %v695 = vld [vmem:[%s692 + $0x10] sm:$0xff]
  %v696 = vld [vmem:[%s692 + $0x18] sm:$0xff]
  %v697 = vld [vmem:[%s692 + $0x20] sm:$0xff]
  %v698 = vld [vmem:[%s692 + $0x28] sm:$0xff]
  %v699 = vld [vmem:[%s692 + $0x30] sm:$0xff]
  %v700 = vld [vmem:[%s692 + $0x38] sm:$0xff]
  %v701 = vld [vmem:[%s692 + $0x40] sm:$0xff]
  %v702 = vld [vmem:[%s692 + $0x48] sm:$0xff]
  %v703 = vld [vmem:[%s692 + $0x50] sm:$0xff]
  %v704 = vld [vmem:[%s692 + $0x58] sm:$0xff]
  %v705 = vld [vmem:[%s692 + $0x60] sm:$0xff]
  %v706 = vld [vmem:[%s692 + $0x68] sm:$0xff]
  %v707 = vld [vmem:[%s692 + $0x70] sm:$0xff]
  %v708 = vld [vmem:[%s692 + $0x78] sm:$0xff]
  %v709 = vld [vmem:[%s692 + $0x80] sm:$0xff]
  %v710 = vld [vmem:[%s692 + $0x88] sm:$0xff]
  %v711 = vld [vmem:[%s692 + $0x90] sm:$0xff]
  %v712 = vld [vmem:[%s692 + $0x98] sm:$0xff]
  %v713 = vld [vmem:[%s692 + $0xa0] sm:$0xff]
  %v714 = vld [vmem:[%s692 + $0xa8] sm:$0xff]
  %v715 = vld [vmem:[%s692 + $0xb0] sm:$0xff]
  %v716 = vld [vmem:[%s692 + $0xb8] sm:$0xff]
  %v717 = vld [vmem:[%s692 + $0xc0] sm:$0xff]
  %v718 = vld [vmem:[%s692 + $0xc8] sm:$0xff]
  %v719 = vld [vmem:[%s692 + $0xd0] sm:$0xff]
  %v720 = vld [vmem:[%s692 + $0xd8] sm:$0xff]
  %v721 = vld [vmem:[%s692 + $0xe0] sm:$0xff]
  %v722 = vld [vmem:[%s692 + $0xe8] sm:$0xff]
  %v723 = vld [vmem:[%s692 + $0xf0] sm:$0xff]
  %v724 = vld [vmem:[%s692 + $0xf8] sm:$0xff]
  %v725 = vld [vmem:[%s692 + $0x100] sm:$0xff]
  %v726 = vld [vmem:[%s692 + $0x108] sm:$0xff]
  %v727 = vld [vmem:[%s692 + $0x110] sm:$0xff]
  %v728 = vld [vmem:[%s692 + $0x118] sm:$0xff]
  %v729 = vld [vmem:[%s692 + $0x120] sm:$0x77]
  %v730 = vld [vmem:[%s692 + $0x128] sm:$0x77]
  %v769 = vunpack.c.l.b16 %v693
  %v770 = vunpack.c.h.b16 %v693
  %v771 = vunpack.c.l.b16 %v694
  %v772 = vunpack.c.h.b16 %v694
  %v773 = vunpack.c.l.b16 %v695
  %v774 = vunpack.c.h.b16 %v695
  %v775 = vunpack.c.l.b16 %v696
  %v776 = vunpack.c.h.b16 %v696
  %v777 = vunpack.c.l.b16 %v697
  %v778 = vunpack.c.h.b16 %v697
  %v779 = vunpack.c.l.b16 %v698
  %v780 = vunpack.c.h.b16 %v698
  %v781 = vunpack.c.l.b16 %v699
  %v782 = vunpack.c.h.b16 %v699
  %v783 = vunpack.c.l.b16 %v700
  %v784 = vunpack.c.h.b16 %v700
  %v785 = vunpack.c.l.b16 %v701
  %v786 = vunpack.c.h.b16 %v701
  %v787 = vunpack.c.l.b16 %v702
  %v788 = vunpack.c.h.b16 %v702
  %v789 = vunpack.c.l.b16 %v703
  %v790 = vunpack.c.h.b16 %v703
  %v791 = vunpack.c.l.b16 %v704
  %v792 = vunpack.c.h.b16 %v704
  %v793 = vunpack.c.l.b16 %v705
  %v794 = vunpack.c.h.b16 %v705
  %v795 = vunpack.c.l.b16 %v706
  %v796 = vunpack.c.h.b16 %v706
  %v797 = vunpack.c.l.b16 %v707
  %v798 = vunpack.c.h.b16 %v707
  %v799 = vunpack.c.l.b16 %v708
  %v800 = vunpack.c.h.b16 %v708
  %v801 = vunpack.c.l.b16 %v709
  %v802 = vunpack.c.h.b16 %v709
  %v803 = vunpack.c.l.b16 %v710
  %v804 = vunpack.c.h.b16 %v710
  %v805 = vunpack.c.l.b16 %v711
  %v806 = vunpack.c.h.b16 %v711
  %v807 = vunpack.c.l.b16 %v712
  %v808 = vunpack.c.h.b16 %v712
  %v809 = vunpack.c.l.b16 %v713
  %v810 = vunpack.c.h.b16 %v713
  %v811 = vunpack.c.l.b16 %v714
  %v812 = vunpack.c.h.b16 %v714
  %v813 = vunpack.c.l.b16 %v715
  %v814 = vunpack.c.h.b16 %v715
  %v815 = vunpack.c.l.b16 %v716
  %v816 = vunpack.c.h.b16 %v716
  %v817 = vunpack.c.l.b16 %v717
  %v818 = vunpack.c.h.b16 %v717
  %v819 = vunpack.c.l.b16 %v718
  %v820 = vunpack.c.h.b16 %v718
  %v821 = vunpack.c.l.b16 %v719
  %v822 = vunpack.c.h.b16 %v719
  %v823 = vunpack.c.l.b16 %v720
  %v824 = vunpack.c.h.b16 %v720
  %v825 = vunpack.c.l.b16 %v721
  %v826 = vunpack.c.h.b16 %v721
  %v827 = vunpack.c.l.b16 %v722
  %v828 = vunpack.c.h.b16 %v722
  %v829 = vunpack.c.l.b16 %v723
  %v830 = vunpack.c.h.b16 %v723
  %v831 = vunpack.c.l.b16 %v724
  %v832 = vunpack.c.h.b16 %v724
  %v833 = vunpack.c.l.b16 %v725
  %v834 = vunpack.c.h.b16 %v725
  %v835 = vunpack.c.l.b16 %v726
  %v836 = vunpack.c.h.b16 %v726
  %v837 = vunpack.c.l.b16 %v727
  %v838 = vunpack.c.h.b16 %v727
  %v839 = vunpack.c.l.b16 %v728
  %v840 = vunpack.c.h.b16 %v728
  %v841 = vunpack.c.l.b16 %v729
  %v842 = vunpack.c.h.b16 %v729
  %v843 = vunpack.c.l.b16 %v730
  %v844 = vunpack.c.h.b16 %v730
  %v845 = vpack.c.b16 %v773, %v769
  %v846 = vpack.c.b16 %v774, %v770
  %v847 = vpack.c.b16 %v775, %v771
  %v848 = vpack.c.b16 %v776, %v772
  %v849 = vpack.c.b16 %v781, %v777
  %v850 = vpack.c.b16 %v782, %v778
  %v851 = vpack.c.b16 %v783, %v779
  %v852 = vpack.c.b16 %v784, %v780
  %v853 = vpack.c.b16 %v789, %v785
  %v854 = vpack.c.b16 %v790, %v786
  %v855 = vpack.c.b16 %v791, %v787
  %v856 = vpack.c.b16 %v792, %v788
  %v857 = vpack.c.b16 %v797, %v793
  %v858 = vpack.c.b16 %v798, %v794
  %v859 = vpack.c.b16 %v799, %v795
  %v860 = vpack.c.b16 %v800, %v796
  %v861 = vpack.c.b16 %v805, %v801
  %v862 = vpack.c.b16 %v806, %v802
  %v863 = vpack.c.b16 %v807, %v803
  %v864 = vpack.c.b16 %v808, %v804
  %v865 = vpack.c.b16 %v813, %v809
  %v866 = vpack.c.b16 %v814, %v810
  %v867 = vpack.c.b16 %v815, %v811
  %v868 = vpack.c.b16 %v816, %v812
  %v869 = vpack.c.b16 %v821, %v817
  %v870 = vpack.c.b16 %v822, %v818
  %v871 = vpack.c.b16 %v823, %v819
  %v872 = vpack.c.b16 %v824, %v820
  %v873 = vpack.c.b16 %v829, %v825
  %v874 = vpack.c.b16 %v830, %v826
  %v875 = vpack.c.b16 %v831, %v827
  %v876 = vpack.c.b16 %v832, %v828
  %v877 = vpack.c.b16 %v837, %v833
  %v878 = vpack.c.b16 %v838, %v834
  %v879 = vpack.c.b16 %v839, %v835
  %v880 = vpack.c.b16 %v840, %v836
  %v881 = vpack.c.b16 %v841, %v841
  %v882 = vpack.c.b16 %v842, %v842
  %v883 = vpack.c.b16 %v843, %v843
  %v884 = vpack.c.b16 %v844, %v844
  %v922 = vsel %vm258, %v881, 0
  %v925 = vsel %vm258, %v882, 0
  %v928 = vsel %vm258, %v883, 0
  %v931 = vsel %vm258, %v884, 0
  %933 = vmatprep.subr.bf16.mxu0 %v874
  %934 = vmatpush1.bf16.msra.mxu0 %v873
  %935 = vmatprep.subr.bf16.mxu0 %v870
  %936 = vmatpush1.bf16.msra.mxu0 %v869
  %937 = vmatprep.subr.bf16.mxu0 %v866
  %938 = vmatpush1.bf16.msra.mxu0 %v865
  %939 = vmatprep.subr.bf16.mxu0 %v862
  %940 = vmatpush1.bf16.msra.mxu0 %v861
  %941 = vmatprep.subr.bf16.mxu0 %v858
  %942 = vmatpush1.bf16.msra.mxu0 %v857
  %943 = vmatprep.subr.bf16.mxu0 %v854
  %944 = vmatpush1.bf16.msra.mxu0 %v853
  %945 = vmatprep.subr.bf16.mxu0 %v850
  %946 = vmatpush1.bf16.msra.mxu0 %v849
  %947 = vmatprep.subr.bf16.mxu0 %v846
  %948 = vmatpush1.bf16.msra.mxu0 %v845
  %949 = vmatprep.subr.bf16.mxu0 0
  %950 = vmatpush2.bf16.msra.mxu0 0
  %951 = vmatprep.subr.bf16.mxu0 0
  %952 = vmatpush2.bf16.msra.mxu0 0
  %953 = vmatprep.subr.bf16.mxu0 0
  %954 = vmatpush2.bf16.msra.mxu0 0
  %955 = vmatprep.subr.bf16.mxu0 0
  %956 = vmatpush2.bf16.msra.mxu0 0
  %957 = vmatprep.subr.bf16.mxu0 0
  %958 = vmatpush2.bf16.msra.mxu0 0
  %959 = vmatprep.subr.bf16.mxu0 0
  %960 = vmatpush2.bf16.msra.mxu0 0
  %961 = vmatprep.subr.bf16.mxu0 %v925
  %962 = vmatpush2.bf16.msra.mxu0 %v922
  %963 = vmatprep.subr.bf16.mxu0 %v878
  %964 = vmatpush2.bf16.msra.mxu0 %v877
  %965 = vmatprep.mubr.bf16.mxu0 %v256
  %966 = vmatmul.mubr.bf16.gmra.mxu0 %v61
  %v967 = vpop.f32.mrf.mxu0
  %v968 = vadd.f32 0.0, %v967
  %v969 = vpop.f32.mrf.mxu0
  %v970 = vadd.f32 0.0, %v969
  %v971 = vpop.f32.mrf.mxu0
  %v972 = vadd.f32 0.0, %v971
  %v973 = vpop.f32.mrf.mxu0
  %v974 = vadd.f32 0.0, %v973
  %975 = vdwg.mxu0
  %976 = vmatprep.subr.bf16.mxu0 %v876
  %977 = vmatpush1.bf16.msra.mxu0 %v875
  %978 = vmatprep.subr.bf16.mxu0 %v872
  %979 = vmatpush1.bf16.msra.mxu0 %v871
  %980 = vmatprep.subr.bf16.mxu0 %v868
  %981 = vmatpush1.bf16.msra.mxu0 %v867
  %982 = vmatprep.subr.bf16.mxu0 %v864
  %983 = vmatpush1.bf16.msra.mxu0 %v863
  %984 = vmatprep.subr.bf16.mxu0 %v860
  %985 = vmatpush1.bf16.msra.mxu0 %v859
  %986 = vmatprep.subr.bf16.mxu0 %v856
  %987 = vmatpush1.bf16.msra.mxu0 %v855
  %988 = vmatprep.subr.bf16.mxu0 %v852
  %989 = vmatpush1.bf16.msra.mxu0 %v851
  %990 = vmatprep.subr.bf16.mxu0 %v848
  %991 = vmatpush1.bf16.msra.mxu0 %v847
  %992 = vmatprep.subr.bf16.mxu0 0
  %993 = vmatpush2.bf16.msra.mxu0 0
  %994 = vmatprep.subr.bf16.mxu0 0
  %995 = vmatpush2.bf16.msra.mxu0 0
  %996 = vmatprep.subr.bf16.mxu0 0
  %997 = vmatpush2.bf16.msra.mxu0 0
  %998 = vmatprep.subr.bf16.mxu0 0
  %999 = vmatpush2.bf16.msra.mxu0 0
  %1000 = vmatprep.subr.bf16.mxu0 0
  %1001 = vmatpush2.bf16.msra.mxu0 0
  %1002 = vmatprep.subr.bf16.mxu0 0
  %1003 = vmatpush2.bf16.msra.mxu0 0
  %1004 = vmatprep.subr.bf16.mxu0 %v931
  %1005 = vmatpush2.bf16.msra.mxu0 %v928
  %1006 = vmatprep.subr.bf16.mxu0 %v880
  %1007 = vmatpush2.bf16.msra.mxu0 %v879
  %1008 = vmatprep.mubr.bf16.mxu0 %v256
  %1009 = vmatmul.mubr.bf16.gmra.mxu0 %v61
  %v1010 = vpop.f32.mrf.mxu0
  %v1011 = vadd.f32 0.0, %v1010
  %v1012 = vpop.f32.mrf.mxu0
  %v1013 = vadd.f32 0.0, %v1012
  %v1014 = vpop.f32.mrf.mxu0
  %v1015 = vadd.f32 0.0, %v1014
  %v1016 = vpop.f32.mrf.mxu0
  %v1017 = vadd.f32 0.0, %v1016
  %1018 = vdwg.mxu0
  %v1019 = vmax.f32 %v684, %v968
  %v1020 = vmax.f32 %v685, %v970
  %v1021 = vmax.f32 %v686, %v1011
  %v1022 = vmax.f32 %v687, %v1013
  %v1023 = vmax.f32 %v688, %v972
  %v1024 = vmax.f32 %v689, %v974
  %v1025 = vmax.f32 %v690, %v1015
  %v1026 = vmax.f32 %v691, %v1017
  %s1027 = scalar_lea.vmem %s0, 912
  %v1028 = vld [vmem:[%s1027] sm:$0xff]
  %v1029 = vld [vmem:[%s1027 + $0x8] sm:$0xff]
  %v1030 = vld [vmem:[%s1027 + $0x10] sm:$0xff]
  %v1031 = vld [vmem:[%s1027 + $0x18] sm:$0xff]
  %v1032 = vld [vmem:[%s1027 + $0x20] sm:$0xff]
  %v1033 = vld [vmem:[%s1027 + $0x28] sm:$0xff]
  %v1034 = vld [vmem:[%s1027 + $0x30] sm:$0xff]
  %v1035 = vld [vmem:[%s1027 + $0x38] sm:$0xff]
  %v1036 = vld [vmem:[%s1027 + $0x40] sm:$0xff]
  %v1037 = vld [vmem:[%s1027 + $0x48] sm:$0xff]
  %v1038 = vld [vmem:[%s1027 + $0x50] sm:$0xff]
  %v1039 = vld [vmem:[%s1027 + $0x58] sm:$0xff]
  %v1040 = vld [vmem:[%s1027 + $0x60] sm:$0xff]
  %v1041 = vld [vmem:[%s1027 + $0x68] sm:$0xff]
  %v1042 = vld [vmem:[%s1027 + $0x70] sm:$0xff]
  %v1043 = vld [vmem:[%s1027 + $0x78] sm:$0xff]
  %v1044 = vld [vmem:[%s1027 + $0x80] sm:$0xff]
  %v1045 = vld [vmem:[%s1027 + $0x88] sm:$0xff]
  %v1046 = vld [vmem:[%s1027 + $0x90] sm:$0xff]
  %v1047 = vld [vmem:[%s1027 + $0x98] sm:$0xff]
  %v1048 = vld [vmem:[%s1027 + $0xa0] sm:$0xff]
  %v1049 = vld [vmem:[%s1027 + $0xa8] sm:$0xff]
  %v1050 = vld [vmem:[%s1027 + $0xb0] sm:$0xff]
  %v1051 = vld [vmem:[%s1027 + $0xb8] sm:$0xff]
  %v1052 = vld [vmem:[%s1027 + $0xc0] sm:$0xff]
  %v1053 = vld [vmem:[%s1027 + $0xc8] sm:$0xff]
  %v1054 = vld [vmem:[%s1027 + $0xd0] sm:$0xff]
  %v1055 = vld [vmem:[%s1027 + $0xd8] sm:$0xff]
  %v1056 = vld [vmem:[%s1027 + $0xe0] sm:$0xff]
  %v1057 = vld [vmem:[%s1027 + $0xe8] sm:$0xff]
  %v1058 = vld [vmem:[%s1027 + $0xf0] sm:$0xff]
  %v1059 = vld [vmem:[%s1027 + $0xf8] sm:$0xff]
  %v1060 = vld [vmem:[%s1027 + $0x100] sm:$0xff]
  %v1061 = vld [vmem:[%s1027 + $0x108] sm:$0xff]
  %v1062 = vld [vmem:[%s1027 + $0x110] sm:$0xff]
  %v1063 = vld [vmem:[%s1027 + $0x118] sm:$0xff]
  %v1064 = vld [vmem:[%s1027 + $0x120] sm:$0x77]
  %v1065 = vld [vmem:[%s1027 + $0x128] sm:$0x77]
  %v1104 = vunpack.c.l.b16 %v1028
  %v1105 = vunpack.c.h.b16 %v1028
  %v1106 = vunpack.c.l.b16 %v1029
  %v1107 = vunpack.c.h.b16 %v1029
  %v1108 = vunpack.c.l.b16 %v1030
  %v1109 = vunpack.c.h.b16 %v1030
  %v1110 = vunpack.c.l.b16 %v1031
  %v1111 = vunpack.c.h.b16 %v1031
  %v1112 = vunpack.c.l.b16 %v1032
  %v1113 = vunpack.c.h.b16 %v1032
  %v1114 = vunpack.c.l.b16 %v1033
  %v1115 = vunpack.c.h.b16 %v1033
  %v1116 = vunpack.c.l.b16 %v1034
  %v1117 = vunpack.c.h.b16 %v1034
  %v1118 = vunpack.c.l.b16 %v1035
  %v1119 = vunpack.c.h.b16 %v1035
  %v1120 = vunpack.c.l.b16 %v1036
  %v1121 = vunpack.c.h.b16 %v1036
  %v1122 = vunpack.c.l.b16 %v1037
  %v1123 = vunpack.c.h.b16 %v1037
  %v1124 = vunpack.c.l.b16 %v1038
  %v1125 = vunpack.c.h.b16 %v1038
  %v1126 = vunpack.c.l.b16 %v1039
  %v1127 = vunpack.c.h.b16 %v1039
  %v1128 = vunpack.c.l.b16 %v1040
  %v1129 = vunpack.c.h.b16 %v1040
  %v1130 = vunpack.c.l.b16 %v1041
  %v1131 = vunpack.c.h.b16 %v1041
  %v1132 = vunpack.c.l.b16 %v1042
  %v1133 = vunpack.c.h.b16 %v1042
  %v1134 = vunpack.c.l.b16 %v1043
  %v1135 = vunpack.c.h.b16 %v1043
  %v1136 = vunpack.c.l.b16 %v1044
  %v1137 = vunpack.c.h.b16 %v1044
  %v1138 = vunpack.c.l.b16 %v1045
  %v1139 = vunpack.c.h.b16 %v1045
  %v1140 = vunpack.c.l.b16 %v1046
  %v1141 = vunpack.c.h.b16 %v1046
  %v1142 = vunpack.c.l.b16 %v1047
  %v1143 = vunpack.c.h.b16 %v1047
  %v1144 = vunpack.c.l.b16 %v1048
  %v1145 = vunpack.c.h.b16 %v1048
  %v1146 = vunpack.c.l.b16 %v1049
  %v1147 = vunpack.c.h.b16 %v1049
  %v1148 = vunpack.c.l.b16 %v1050
  %v1149 = vunpack.c.h.b16 %v1050
  %v1150 = vunpack.c.l.b16 %v1051
  %v1151 = vunpack.c.h.b16 %v1051
  %v1152 = vunpack.c.l.b16 %v1052
  %v1153 = vunpack.c.h.b16 %v1052
  %v1154 = vunpack.c.l.b16 %v1053
  %v1155 = vunpack.c.h.b16 %v1053
  %v1156 = vunpack.c.l.b16 %v1054
  %v1157 = vunpack.c.h.b16 %v1054
  %v1158 = vunpack.c.l.b16 %v1055
  %v1159 = vunpack.c.h.b16 %v1055
  %v1160 = vunpack.c.l.b16 %v1056
  %v1161 = vunpack.c.h.b16 %v1056
  %v1162 = vunpack.c.l.b16 %v1057
  %v1163 = vunpack.c.h.b16 %v1057
  %v1164 = vunpack.c.l.b16 %v1058
  %v1165 = vunpack.c.h.b16 %v1058
  %v1166 = vunpack.c.l.b16 %v1059
  %v1167 = vunpack.c.h.b16 %v1059
  %v1168 = vunpack.c.l.b16 %v1060
  %v1169 = vunpack.c.h.b16 %v1060
  %v1170 = vunpack.c.l.b16 %v1061
  %v1171 = vunpack.c.h.b16 %v1061
  %v1172 = vunpack.c.l.b16 %v1062
  %v1173 = vunpack.c.h.b16 %v1062
  %v1174 = vunpack.c.l.b16 %v1063
  %v1175 = vunpack.c.h.b16 %v1063
  %v1176 = vunpack.c.l.b16 %v1064
  %v1177 = vunpack.c.h.b16 %v1064
  %v1178 = vunpack.c.l.b16 %v1065
  %v1179 = vunpack.c.h.b16 %v1065
  %v1180 = vpack.c.b16 %v1108, %v1104
  %v1181 = vpack.c.b16 %v1109, %v1105
  %v1182 = vpack.c.b16 %v1110, %v1106
  %v1183 = vpack.c.b16 %v1111, %v1107
  %v1184 = vpack.c.b16 %v1116, %v1112
  %v1185 = vpack.c.b16 %v1117, %v1113
  %v1186 = vpack.c.b16 %v1118, %v1114
  %v1187 = vpack.c.b16 %v1119, %v1115
  %v1188 = vpack.c.b16 %v1124, %v1120
  %v1189 = vpack.c.b16 %v1125, %v1121
  %v1190 = vpack.c.b16 %v1126, %v1122
  %v1191 = vpack.c.b16 %v1127, %v1123
  %v1192 = vpack.c.b16 %v1132, %v1128
  %v1193 = vpack.c.b16 %v1133, %v1129
  %v1194 = vpack.c.b16 %v1134, %v1130
  %v1195 = vpack.c.b16 %v1135, %v1131
  %v1196 = vpack.c.b16 %v1140, %v1136
  %v1197 = vpack.c.b16 %v1141, %v1137
  %v1198 = vpack.c.b16 %v1142, %v1138
  %v1199 = vpack.c.b16 %v1143, %v1139
  %v1200 = vpack.c.b16 %v1148, %v1144
  %v1201 = vpack.c.b16 %v1149, %v1145
  %v1202 = vpack.c.b16 %v1150, %v1146
  %v1203 = vpack.c.b16 %v1151, %v1147
  %v1204 = vpack.c.b16 %v1156, %v1152
  %v1205 = vpack.c.b16 %v1157, %v1153
  %v1206 = vpack.c.b16 %v1158, %v1154
  %v1207 = vpack.c.b16 %v1159, %v1155
  %v1208 = vpack.c.b16 %v1164, %v1160
  %v1209 = vpack.c.b16 %v1165, %v1161
  %v1210 = vpack.c.b16 %v1166, %v1162
  %v1211 = vpack.c.b16 %v1167, %v1163
  %v1212 = vpack.c.b16 %v1172, %v1168
  %v1213 = vpack.c.b16 %v1173, %v1169
  %v1214 = vpack.c.b16 %v1174, %v1170
  %v1215 = vpack.c.b16 %v1175, %v1171
  %v1216 = vpack.c.b16 %v1176, %v1176
  %v1217 = vpack.c.b16 %v1177, %v1177
  %v1218 = vpack.c.b16 %v1178, %v1178
  %v1219 = vpack.c.b16 %v1179, %v1179
  %v1257 = vsel %vm258, %v1216, 0
  %v1260 = vsel %vm258, %v1217, 0
  %v1263 = vsel %vm258, %v1218, 0
  %v1266 = vsel %vm258, %v1219, 0
  %1268 = vmatprep.subr.bf16.mxu0 %v1209
  %1269 = vmatpush1.bf16.msra.mxu0 %v1208
  %1270 = vmatprep.subr.bf16.mxu0 %v1205
  %1271 = vmatpush1.bf16.msra.mxu0 %v1204
  %1272 = vmatprep.subr.bf16.mxu0 %v1201
  %1273 = vmatpush1.bf16.msra.mxu0 %v1200
  %1274 = vmatprep.subr.bf16.mxu0 %v1197
  %1275 = vmatpush1.bf16.msra.mxu0 %v1196
  %1276 = vmatprep.subr.bf16.mxu0 %v1193
  %1277 = vmatpush1.bf16.msra.mxu0 %v1192
  %1278 = vmatprep.subr.bf16.mxu0 %v1189
  %1279 = vmatpush1.bf16.msra.mxu0 %v1188
  %1280 = vmatprep.subr.bf16.mxu0 %v1185
  %1281 = vmatpush1.bf16.msra.mxu0 %v1184
  %1282 = vmatprep.subr.bf16.mxu0 %v1181
  %1283 = vmatpush1.bf16.msra.mxu0 %v1180
  %1284 = vmatprep.subr.bf16.mxu0 0
  %1285 = vmatpush2.bf16.msra.mxu0 0
  %1286 = vmatprep.subr.bf16.mxu0 0
  %1287 = vmatpush2.bf16.msra.mxu0 0
  %1288 = vmatprep.subr.bf16.mxu0 0
  %1289 = vmatpush2.bf16.msra.mxu0 0
  %1290 = vmatprep.subr.bf16.mxu0 0
  %1291 = vmatpush2.bf16.msra.mxu0 0
  %1292 = vmatprep.subr.bf16.mxu0 0
  %1293 = vmatpush2.bf16.msra.mxu0 0
  %1294 = vmatprep.subr.bf16.mxu0 0
  %1295 = vmatpush2.bf16.msra.mxu0 0
  %1296 = vmatprep.subr.bf16.mxu0 %v1260
  %1297 = vmatpush2.bf16.msra.mxu0 %v1257
  %1298 = vmatprep.subr.bf16.mxu0 %v1213
  %1299 = vmatpush2.bf16.msra.mxu0 %v1212
  %1300 = vmatprep.mubr.bf16.mxu0 %v256
  %1301 = vmatmul.mubr.bf16.gmra.mxu0 %v61
  %v1302 = vpop.f32.mrf.mxu0
  %v1303 = vadd.f32 0.0, %v1302
  %v1304 = vpop.f32.mrf.mxu0
  %v1305 = vadd.f32 0.0, %v1304
  %v1306 = vpop.f32.mrf.mxu0
  %v1307 = vadd.f32 0.0, %v1306
  %v1308 = vpop.f32.mrf.mxu0
  %v1309 = vadd.f32 0.0, %v1308
  %1310 = vdwg.mxu0
  %1311 = vmatprep.subr.bf16.mxu0 %v1211
  %1312 = vmatpush1.bf16.msra.mxu0 %v1210
  %1313 = vmatprep.subr.bf16.mxu0 %v1207
  %1314 = vmatpush1.bf16.msra.mxu0 %v1206
  %1315 = vmatprep.subr.bf16.mxu0 %v1203
  %1316 = vmatpush1.bf16.msra.mxu0 %v1202
  %1317 = vmatprep.subr.bf16.mxu0 %v1199
  %1318 = vmatpush1.bf16.msra.mxu0 %v1198
  %1319 = vmatprep.subr.bf16.mxu0 %v1195
  %1320 = vmatpush1.bf16.msra.mxu0 %v1194
  %1321 = vmatprep.subr.bf16.mxu0 %v1191
  %1322 = vmatpush1.bf16.msra.mxu0 %v1190
  %1323 = vmatprep.subr.bf16.mxu0 %v1187
  %1324 = vmatpush1.bf16.msra.mxu0 %v1186
  %1325 = vmatprep.subr.bf16.mxu0 %v1183
  %1326 = vmatpush1.bf16.msra.mxu0 %v1182
  %1327 = vmatprep.subr.bf16.mxu0 0
  %1328 = vmatpush2.bf16.msra.mxu0 0
  %1329 = vmatprep.subr.bf16.mxu0 0
  %1330 = vmatpush2.bf16.msra.mxu0 0
  %1331 = vmatprep.subr.bf16.mxu0 0
  %1332 = vmatpush2.bf16.msra.mxu0 0
  %1333 = vmatprep.subr.bf16.mxu0 0
  %1334 = vmatpush2.bf16.msra.mxu0 0
  %1335 = vmatprep.subr.bf16.mxu0 0
  %1336 = vmatpush2.bf16.msra.mxu0 0
  %1337 = vmatprep.subr.bf16.mxu0 0
  %1338 = vmatpush2.bf16.msra.mxu0 0
  %1339 = vmatprep.subr.bf16.mxu0 %v1266
  %1340 = vmatpush2.bf16.msra.mxu0 %v1263
  %1341 = vmatprep.subr.bf16.mxu0 %v1215
  %1342 = vmatpush2.bf16.msra.mxu0 %v1214
  %1343 = vmatprep.mubr.bf16.mxu0 %v256
  %1344 = vmatmul.mubr.bf16.gmra.mxu0 %v61
  %v1345 = vpop.f32.mrf.mxu0
  %v1346 = vadd.f32 0.0, %v1345
  %v1347 = vpop.f32.mrf.mxu0
  %v1348 = vadd.f32 0.0, %v1347
  %v1349 = vpop.f32.mrf.mxu0
  %v1350 = vadd.f32 0.0, %v1349
  %v1351 = vpop.f32.mrf.mxu0
  %v1352 = vadd.f32 0.0, %v1351
  %1353 = vdwg.mxu0
  %v1354 = vmax.f32 %v1019, %v1303
  %v1355 = vmax.f32 %v1020, %v1305
  %v1356 = vmax.f32 %v1021, %v1346
  %v1357 = vmax.f32 %v1022, %v1348
  %v1358 = vmax.f32 %v1023, %v1307
  %v1359 = vmax.f32 %v1024, %v1309
  %v1360 = vmax.f32 %v1025, %v1350
  %v1361 = vmax.f32 %v1026, %v1352
  %v1362 = vld [vmem:[%s2] sm:$0xff]
  %v1363 = vld [vmem:[%s2 + $0x8] sm:$0xff]
  %1365 = vset.pattern.permute.xlu0 0
  %1366 = vperm.xlu0 %1365, %v1362
  %v1367 = vpop.permute.xlu0 %1366
  %1370 = vset.pattern.permute.xlu0 0
  %1371 = vperm.xlu0 %1370, %v1363
  %v1372 = vpop.permute.xlu0 %1371
  %v1374 = vadd.f32 %v1354, %v1367
  %v1375 = vadd.f32 %v1355, %v1367
  %v1376 = vadd.f32 %v1356, %v1367
  %v1377 = vadd.f32 %v1357, %v1367
  %v1378 = vadd.f32 %v1358, %v1372
  %v1379 = vadd.f32 %v1359, %v1372
  %v1380 = vadd.f32 %v1360, %v1372
  %v1381 = vadd.f32 %v1361, %v1372
  %v1382 = vmax.f32 %v1374, 0.0
  %v1383 = vmax.f32 %v1375, 0.0
  %v1384 = vmax.f32 %v1376, 0.0
  %v1385 = vmax.f32 %v1377, 0.0
  %v1386 = vmax.f32 %v1378, 0.0
  %v1387 = vmax.f32 %v1379, 0.0
  %v1388 = vmax.f32 %v1380, 0.0
  %v1389 = vmax.f32 %v1381, 0.0
  %1390 = vst [vmem:[%s3] sm:$0xff] %v1382
  %1391 = vst [vmem:[%s3 + $0x8] sm:$0xff] %v1383
  %1392 = vst [vmem:[%s3 + $0x10] sm:$0xff] %v1384
  %1393 = vst [vmem:[%s3 + $0x18] sm:$0xff] %v1385
  %1394 = vst [vmem:[%s3 + $0x20] sm:$0xff] %v1386
  %1395 = vst [vmem:[%s3 + $0x28] sm:$0xff] %v1387
  %1396 = vst [vmem:[%s3 + $0x30] sm:$0xff] %v1388
  %1397 = vst [vmem:[%s3 + $0x38] sm:$0xff] %v1389
  // Predicated region
  $region14: #{net_original_forward.4} parent=0 // pred_check
    _
  $region15: #{net_original_forward.4} parent=0 // pred_check_branch
    %1399 = sbr.rel (0) target = $region17
  $region16: #{net_original_forward.4} parent=0 // pred_region
    _
  $region17: #{net_original_forward.4} parent=0 // pred_fallthru
    _
  // Predicated region
  $region18: #{net_original_forward.4} parent=0 // pred_check
    _
  $region19: #{net_original_forward.4} parent=0 // pred_check_branch
    %1401 = sbr.rel (0) target = $region21
  $region20: #{net_original_forward.4} parent=0 // pred_region
    _
  $region21: #{net_original_forward.4} parent=0 // pred_fallthru
    _

// kernel: net_original_forward.5
$region0: #{net_original_forward.5}
  #allocation0 [shape = 'u32[]', space=smem, size = 0x4, offset = 0x4, fixed_abs, tag = 'smem constant byte address 0x4 - core index']
  #allocation1 [shape = 'u32[144,128]{1,0:T(1,128)}', space=vmem, size = 0x12000, scoped, tag = 'internal scratch']
  %s0 = inlined_call_operand.vmem [shape: bf16[2,400], index: 0, kind: input, shape index: {}]
  %s1 = inlined_call_operand.vmem [shape: bf16[400,120], index: 1, kind: input, shape index: {}]
  %s2 = inlined_call_operand.vmem [shape: f32[1,120], index: 2, kind: input, shape index: {}]
  %s3 = inlined_call_operand.vmem [shape: bf16[120,84], index: 3, kind: input, shape index: {}]
  %s4 = inlined_call_operand.vmem [shape: f32[1,84], index: 4, kind: input, shape index: {}]
  %s5 = inlined_call_operand.vmem [shape: bf16[84,10], index: 5, kind: input, shape index: {}]
  %s6 = inlined_call_operand.vmem [shape: f32[1,10], index: 6, kind: input, shape index: {}]
  %s7 = inlined_call_operand.hbm [shape: f32[2,10], index: 7, kind: output, shape index: {0}]
  %s8 = inlined_call_operand.hbm [shape: f32[2,84], index: 8, kind: output, shape index: {1}]
  %s9 = inlined_call_operand.hbm [shape: f32[2,120], index: 9, kind: output, shape index: {2}]
  %10 = xla_tuple %s7, %s8, %s9
  %s11 = sld [smem:[#allocation0]]
  $region54: #{net_original_forward.5} parent=0
    _
  %s13 = ssub.s32 1, %s11
  %s14 = scalar_select 0, %s13, %s11
  $region1: #{net_original_forward.5} parent=0
    #allocation2 [shape = 'u8[1024]{0}', space=vmem, size = 0x400, scoped, tag = 'output window, operand 0, single buffered']
    #allocation3 [shape = 's32[1]{0}', space=sflag, size = 0x4, scoped, tag = 'scoped memory for net_original_forward.5']
    #allocation4 [shape = 'u8[1024]{0}', space=vmem, size = 0x400, scoped, tag = 'output window, operand 1, single buffered']
    #allocation5 [shape = 's32[1]{0}', space=sflag, size = 0x4, scoped, tag = 'scoped memory for net_original_forward.5']
    #allocation6 [shape = 'u8[1024]{0}', space=vmem, size = 0x400, scoped, tag = 'output window, operand 2, single buffered']
    %15 = vsyncpa [#allocation3], 0
    %16 = vsyncpa [#allocation5], 0
    // Predicated region
    $region2: #{net_original_forward.5} parent=1 // pred_check
      _
    $region3: #{net_original_forward.5} parent=1 // pred_check_branch
      %18 = sbr.rel (0) target = $region5
    $region4: #{net_original_forward.5} parent=1 // pred_region
      _
    $region5: #{net_original_forward.5} parent=1 // pred_fallthru
      _
    // Predicated region
    $region6: #{net_original_forward.5} parent=1 // pred_check
      _
    $region7: #{net_original_forward.5} parent=1 // pred_check_branch
      %20 = sbr.rel (0) target = $region9
    $region8: #{net_original_forward.5} parent=1 // pred_region
      _
    $region9: #{net_original_forward.5} parent=1 // pred_fallthru
      _
    // Predicated region
    $region10: #{net_original_forward.5} parent=1 // pred_check
      _
    $region11: #{net_original_forward.5} parent=1 // pred_check_branch
      %22 = sbr.rel (0) target = $region13
    $region12: #{net_original_forward.5} parent=1 // pred_region
      _
    $region13: #{net_original_forward.5} parent=1 // pred_fallthru
      _
    // Predicated region
    $region14: #{net_original_forward.5} parent=1 // pred_check
      _
    $region15: #{net_original_forward.5} parent=1 // pred_check_branch
      %24 = sbr.rel (0) target = $region17
    $region16: #{net_original_forward.5} parent=1 // pred_region
      _
    $region17: #{net_original_forward.5} parent=1 // pred_fallthru
      _
    // Predicated region
    $region18: #{net_original_forward.5} parent=1 // pred_check
      _
    $region19: #{net_original_forward.5} parent=1 // pred_check_branch
      %26 = sbr.rel (0) target = $region21
    $region20: #{net_original_forward.5} parent=1 // pred_region
      _
    $region21: #{net_original_forward.5} parent=1 // pred_fallthru
      _
    // Predicated region
    $region22: #{net_original_forward.5} parent=1 // pred_check
      _
    $region23: #{net_original_forward.5} parent=1 // pred_check_branch
      %28 = sbr.rel (0) target = $region25
    $region24: #{net_original_forward.5} parent=1 // pred_region
      _
    $region25: #{net_original_forward.5} parent=1 // pred_fallthru
      _
    // Predicated region
    $region26: #{net_original_forward.5} parent=1 // pred_check
      _
    $region27: #{net_original_forward.5} parent=1 // pred_check_branch
      %30 = sbr.rel (0) target = $region29
    $region28: #{net_original_forward.5} parent=1 // pred_region
      _
    $region29: #{net_original_forward.5} parent=1 // pred_fallthru
      _
    %v32 = vld [vmem:[%s0] sm:$0xf]
    %v33 = vld [vmem:[%s1] sm:$0xf]
    %v34 = vld [vmem:[%s1 + $0x4] sm:$0xf]
    %v35 = vld [vmem:[%s1 + $0x8] sm:$0xf]
    %v36 = vld [vmem:[%s1 + $0xc] sm:$0xf]
    %v37 = vld [vmem:[%s1 + $0x10] sm:$0xf]
    %v38 = vld [vmem:[%s1 + $0x14] sm:$0xf]
    %v39 = vld [vmem:[%s1 + $0x18] sm:$0xf]
    %v40 = vld [vmem:[%s1 + $0x1c] sm:$0xf]
    %v41 = vld [vmem:[%s1 + $0x20] sm:$0xf]
    %v42 = vld [vmem:[%s1 + $0x24] sm:$0xf]
    %v43 = vld [vmem:[%s1 + $0x28] sm:$0xf]
    %v44 = vld [vmem:[%s1 + $0x2c] sm:$0xf]
    %v45 = vld [vmem:[%s1 + $0x30] sm:$0xf]
    %v46 = vld [vmem:[%s1 + $0x34] sm:$0xf]
    %v47 = vld [vmem:[%s1 + $0x38] sm:$0xf]
    %v48 = vld [vmem:[%s1 + $0x3c] sm:$0xf]
    %v49 = vld [vmem:[%s1 + $0x40] sm:$0xf]
    %v50 = vld [vmem:[%s1 + $0x44] sm:$0xf]
    %v51 = vld [vmem:[%s1 + $0x48] sm:$0xf]
    %v52 = vld [vmem:[%s1 + $0x4c] sm:$0xf]
    %v53 = vld [vmem:[%s1 + $0x50] sm:$0xf]
    %v54 = vld [vmem:[%s1 + $0x54] sm:$0xf]
    %v55 = vld [vmem:[%s1 + $0x58] sm:$0xf]
    %v56 = vld [vmem:[%s1 + $0x5c] sm:$0xf]
    %v57 = vld [vmem:[%s1 + $0x60] sm:$0xf]
    %v58 = vld [vmem:[%s1 + $0x64] sm:$0xf]
    %v59 = vld [vmem:[%s1 + $0x68] sm:$0xf]
    %v60 = vld [vmem:[%s1 + $0x6c] sm:$0xf]
    %v61 = vld [vmem:[%s1 + $0x70] sm:$0xf]
    %v62 = vld [vmem:[%s1 + $0x74] sm:$0xf]
    %v63 = vld [vmem:[%s1 + $0x78] sm:$0xf]
    %v64 = vld [vmem:[%s1 + $0x7c] sm:$0xf]
    %v65 = vld [vmem:[%s1 + $0x80] sm:$0xf]
    %v66 = vld [vmem:[%s1 + $0x84] sm:$0xf]
    %v67 = vld [vmem:[%s1 + $0x88] sm:$0xf]
    %v68 = vld [vmem:[%s1 + $0x8c] sm:$0xf]
    %v69 = vld [vmem:[%s1 + $0x90] sm:$0xf]
    %v70 = vld [vmem:[%s1 + $0x94] sm:$0xf]
    %v71 = vld [vmem:[%s1 + $0x98] sm:$0xf]
    %v72 = vld [vmem:[%s1 + $0x9c] sm:$0xf]
    %v73 = vld [vmem:[%s1 + $0xa0] sm:$0xf]
    %v74 = vld [vmem:[%s1 + $0xa4] sm:$0xf]
    %v75 = vld [vmem:[%s1 + $0xa8] sm:$0xf]
    %v76 = vld [vmem:[%s1 + $0xac] sm:$0xf]
    %v77 = vld [vmem:[%s1 + $0xb0] sm:$0xf]
    %v78 = vld [vmem:[%s1 + $0xb4] sm:$0xf]
    %v79 = vld [vmem:[%s1 + $0xb8] sm:$0xf]
    %v80 = vld [vmem:[%s1 + $0xbc] sm:$0xf]
    %v81 = vld [vmem:[%s1 + $0xc0] sm:$0xf]
    %v82 = vld [vmem:[%s1 + $0xc4] sm:$0xf]
    %v83 = vld [vmem:[%s2] sm:$0x1]
    %v85 = vlaneseq
    %v86 = vshrl.u32 %v85, 7
    %v87 = vsub.s32 0, %v86
    %v88 = vrot.slane %v83, %v87
    %v92 = vunpack.c.l.s4 1966171168
    %v93 = vunpack.c.0.s8 %v92
    %v94 = vlaneseq
    %v95 = vshrl.u32 %v94, 7
    %v96 = vsub.s32 %v93, %v95
    %v97 = vrot.slane %v32, %v96
    %v98 = vcombine.high %v97, %v97
    %v100 = vunpack.c.l.s4 1966171168
    %v101 = vunpack.c.0.s8 %v100
    %v102 = vlaneseq
    %v103 = vshrl.u32 %v102, 7
    %v104 = vsub.s32 %v101, %v103
    %v105 = vrot.slane %v97, %v104
    %v107 = vunpack.c.l.s4 1966171168
    %v108 = vunpack.c.0.s8 %v107
    %v109 = vlaneseq
    %v110 = vshrl.u32 %v109, 7
    %v111 = vsub.s32 %v108, %v110
    %v112 = vrot.slane %v98, %v111
    %v113 = vcombine.high %v105, %v105
    %v114 = vcombine.high %v112, %v112
    %v168 = vunpack.c.l.b16 %v33
    %v169 = vunpack.c.l.b16 %v34
    %v170 = vunpack.c.l.b16 %v35
    %v171 = vunpack.c.l.b16 %v36
    %v172 = vunpack.c.l.b16 %v37
    %v173 = vunpack.c.l.b16 %v38
    %v174 = vunpack.c.l.b16 %v39
    %v175 = vunpack.c.l.b16 %v40
    %v176 = vunpack.c.l.b16 %v41
    %v177 = vunpack.c.l.b16 %v42
    %v178 = vunpack.c.l.b16 %v43
    %v179 = vunpack.c.l.b16 %v44
    %v180 = vunpack.c.l.b16 %v45
    %v181 = vunpack.c.l.b16 %v46
    %v182 = vunpack.c.l.b16 %v47
    %v183 = vunpack.c.l.b16 %v48
    %v184 = vunpack.c.l.b16 %v49
    %v185 = vunpack.c.l.b16 %v50
    %v186 = vunpack.c.l.b16 %v51
    %v187 = vunpack.c.l.b16 %v52
    %v188 = vunpack.c.l.b16 %v53
    %v189 = vunpack.c.l.b16 %v54
    %v190 = vunpack.c.l.b16 %v55
    %v191 = vunpack.c.l.b16 %v56
    %v192 = vunpack.c.l.b16 %v57
    %v193 = vunpack.c.l.b16 %v58
    %v194 = vunpack.c.l.b16 %v59
    %v195 = vunpack.c.l.b16 %v60
    %v196 = vunpack.c.l.b16 %v61
    %v197 = vunpack.c.l.b16 %v62
    %v198 = vunpack.c.l.b16 %v63
    %v199 = vunpack.c.l.b16 %v64
    %v200 = vunpack.c.l.b16 %v65
    %v201 = vunpack.c.l.b16 %v66
    %v202 = vunpack.c.l.b16 %v67
    %v203 = vunpack.c.l.b16 %v68
    %v204 = vunpack.c.l.b16 %v69
    %v205 = vunpack.c.l.b16 %v70
    %v206 = vunpack.c.l.b16 %v71
    %v207 = vunpack.c.l.b16 %v72
    %v208 = vunpack.c.l.b16 %v73
    %v209 = vunpack.c.l.b16 %v74
    %v210 = vunpack.c.l.b16 %v75
    %v211 = vunpack.c.l.b16 %v76
    %v212 = vunpack.c.l.b16 %v77
    %v213 = vunpack.c.l.b16 %v78
    %v214 = vunpack.c.l.b16 %v79
    %v215 = vunpack.c.l.b16 %v80
    %v216 = vunpack.c.l.b16 %v81
    %v217 = vunpack.c.l.b16 %v82
    %v218 = vpack.c.b16 %v169, %v168
    %v219 = vpack.c.b16 %v171, %v170
    %v220 = vpack.c.b16 %v173, %v172
    %v221 = vpack.c.b16 %v175, %v174
    %v222 = vpack.c.b16 %v177, %v176
    %v223 = vpack.c.b16 %v179, %v178
    %v224 = vpack.c.b16 %v181, %v180
    %v225 = vpack.c.b16 %v183, %v182
    %v226 = vpack.c.b16 %v185, %v184
    %v227 = vpack.c.b16 %v187, %v186
    %v228 = vpack.c.b16 %v189, %v188
    %v229 = vpack.c.b16 %v191, %v190
    %v230 = vpack.c.b16 %v193, %v192
    %v231 = vpack.c.b16 %v195, %v194
    %v232 = vpack.c.b16 %v197, %v196
    %v233 = vpack.c.b16 %v199, %v198
    %v234 = vpack.c.b16 %v201, %v200
    %v235 = vpack.c.b16 %v203, %v202
    %v236 = vpack.c.b16 %v205, %v204
    %v237 = vpack.c.b16 %v207, %v206
    %v238 = vpack.c.b16 %v209, %v208
    %v239 = vpack.c.b16 %v211, %v210
    %v240 = vpack.c.b16 %v213, %v212
    %v241 = vpack.c.b16 %v215, %v214
    %v242 = vpack.c.b16 %v217, %v216
    %vm268 = vcmask 130048
    %v270 = vsel %vm268, %v114, 0
    %272 = vmatprep.subr.bf16.mxu0 0
    %273 = vmatpush1.bf16.msra.mxu0 %v225
    %274 = vmatprep.subr.bf16.mxu0 0
    %275 = vmatpush1.bf16.msra.mxu0 %v224
    %276 = vmatprep.subr.bf16.mxu0 0
    %277 = vmatpush1.bf16.msra.mxu0 %v223
    %278 = vmatprep.subr.bf16.mxu0 0
    %279 = vmatpush1.bf16.msra.mxu0 %v222
    %280 = vmatprep.subr.bf16.mxu0 0
    %281 = vmatpush1.bf16.msra.mxu0 %v221
    %282 = vmatprep.subr.bf16.mxu0 0
    %283 = vmatpush1.bf16.msra.mxu0 %v220
    %284 = vmatprep.subr.bf16.mxu0 0
    %285 = vmatpush1.bf16.msra.mxu0 %v219
    %286 = vmatprep.subr.bf16.mxu0 0
    %287 = vmatpush1.bf16.msra.mxu0 %v218
    %288 = vmatprep.subr.bf16.mxu0 0
    %289 = vmatpush2.bf16.msra.mxu0 %v233
    %290 = vmatprep.subr.bf16.mxu0 0
    %291 = vmatpush2.bf16.msra.mxu0 %v232
    %292 = vmatprep.subr.bf16.mxu0 0
    %293 = vmatpush2.bf16.msra.mxu0 %v231
    %294 = vmatprep.subr.bf16.mxu0 0
    %295 = vmatpush2.bf16.msra.mxu0 %v230
    %296 = vmatprep.subr.bf16.mxu0 0
    %297 = vmatpush2.bf16.msra.mxu0 %v229
    %298 = vmatprep.subr.bf16.mxu0 0
    %299 = vmatpush2.bf16.msra.mxu0 %v228
    %300 = vmatprep.subr.bf16.mxu0 0
    %301 = vmatpush2.bf16.msra.mxu0 %v227
    %302 = vmatprep.subr.bf16.mxu0 0
    %303 = vmatpush2.bf16.msra.mxu0 %v226
    %304 = vmatprep.mubr.bf16.mxu0 %v112
    %305 = vmatmul.mubr.bf16.gmra.mxu0 %v105
    %v306 = vpop.f32.mrf.mxu0
    %v307 = vadd.f32 %v88, %v306
    %v308 = vpop.f32.mrf.mxu0
    %v309 = vpop.f32.mrf.mxu0
    %v310 = vpop.f32.mrf.mxu0
    %311 = vdwg.mxu0
    %312 = vmatprep.subr.bf16.mxu0 0
    %313 = vmatpush1.bf16.msra.mxu0 %v241
    %314 = vmatprep.subr.bf16.mxu0 0
    %315 = vmatpush1.bf16.msra.mxu0 %v240
    %316 = vmatprep.subr.bf16.mxu0 0
    %317 = vmatpush1.bf16.msra.mxu0 %v239
    %318 = vmatprep.subr.bf16.mxu0 0
    %319 = vmatpush1.bf16.msra.mxu0 %v238
    %320 = vmatprep.subr.bf16.mxu0 0
    %321 = vmatpush1.bf16.msra.mxu0 %v237
    %322 = vmatprep.subr.bf16.mxu0 0
    %323 = vmatpush1.bf16.msra.mxu0 %v236
    %324 = vmatprep.subr.bf16.mxu0 0
    %325 = vmatpush1.bf16.msra.mxu0 %v235
    %326 = vmatprep.subr.bf16.mxu0 0
    %327 = vmatpush1.bf16.msra.mxu0 %v234
    %328 = vmatprep.subr.bf16.mxu0 0
    %329 = vmatpush2.bf16.msra.mxu0 0
    %330 = vmatprep.subr.bf16.mxu0 0
    %331 = vmatpush2.bf16.msra.mxu0 0
    %332 = vmatprep.subr.bf16.mxu0 0
    %333 = vmatpush2.bf16.msra.mxu0 0
    %334 = vmatprep.subr.bf16.mxu0 0
    %335 = vmatpush2.bf16.msra.mxu0 0
    %336 = vmatprep.subr.bf16.mxu0 0
    %337 = vmatpush2.bf16.msra.mxu0 0
    %338 = vmatprep.subr.bf16.mxu0 0
    %339 = vmatpush2.bf16.msra.mxu0 0
    %340 = vmatprep.subr.bf16.mxu0 0
    %341 = vmatpush2.bf16.msra.mxu0 0
    %342 = vmatprep.subr.bf16.mxu0 0
    %343 = vmatpush2.bf16.msra.mxu0 %v242
    %344 = vmatprep.mubr.bf16.mxu0 %v270
    %345 = vmatmul.mubr.bf16.gmra.mxu0 %v113
    %v346 = vpop.f32.mrf.mxu0
    %v347 = vadd.f32 %v307, %v346
    %v348 = vpop.f32.mrf.mxu0
    %v349 = vpop.f32.mrf.mxu0
    %v350 = vpop.f32.mrf.mxu0
    %351 = vdwg.mxu0
    %v352 = vmax.f32 %v347, 0.0
    %vm353 = vcmask 975872
    %354 = vst.msk [vmem:[#allocation6] sm:$0x3] %vm353, %v352
    %v355 = vpack.c.bf16 %v352, %v352
    %v356 = vld [vmem:[%s3] sm:$0xf]
    %v357 = vld [vmem:[%s3 + $0x4] sm:$0xf]
    %v358 = vld [vmem:[%s3 + $0x8] sm:$0xf]
    %v359 = vld [vmem:[%s3 + $0xc] sm:$0xf]
    %v360 = vld [vmem:[%s3 + $0x10] sm:$0xf]
    %v361 = vld [vmem:[%s3 + $0x14] sm:$0xf]
    %v362 = vld [vmem:[%s3 + $0x18] sm:$0xf]
    %v363 = vld [vmem:[%s3 + $0x1c] sm:$0xf]
    %v364 = vld [vmem:[%s3 + $0x20] sm:$0xf]
    %v365 = vld [vmem:[%s3 + $0x24] sm:$0xf]
    %v366 = vld [vmem:[%s3 + $0x28] sm:$0xf]
    %v367 = vld [vmem:[%s3 + $0x2c] sm:$0xf]
    %v368 = vld [vmem:[%s3 + $0x30] sm:$0xf]
    %v369 = vld [vmem:[%s3 + $0x34] sm:$0xf]
    %v370 = vld [vmem:[%s3 + $0x38] sm:$0xf]
    %v371 = vld [vmem:[%s4] sm:$0x1]
    %v373 = vlaneseq
    %v374 = vshrl.u32 %v373, 7
    %v375 = vsub.s32 0, %v374
    %v376 = vrot.slane %v371, %v375
    %v393 = vunpack.c.l.b16 %v356
    %v394 = vunpack.c.l.b16 %v357
    %v395 = vunpack.c.l.b16 %v358
    %v396 = vunpack.c.l.b16 %v359
    %v397 = vunpack.c.l.b16 %v360
    %v398 = vunpack.c.l.b16 %v361
    %v399 = vunpack.c.l.b16 %v362
    %v400 = vunpack.c.l.b16 %v363
    %v401 = vunpack.c.l.b16 %v364
    %v402 = vunpack.c.l.b16 %v365
    %v403 = vunpack.c.l.b16 %v366
    %v404 = vunpack.c.l.b16 %v367
    %v405 = vunpack.c.l.b16 %v368
    %v406 = vunpack.c.l.b16 %v369
    %v407 = vunpack.c.l.b16 %v370
    %v408 = vpack.c.b16 %v394, %v393
    %v409 = vpack.c.b16 %v396, %v395
    %v410 = vpack.c.b16 %v398, %v397
    %v411 = vpack.c.b16 %v400, %v399
    %v412 = vpack.c.b16 %v402, %v401
    %v413 = vpack.c.b16 %v404, %v403
    %v414 = vpack.c.b16 %v406, %v405
    %v415 = vpack.c.b16 %v407, %v407
    %vm423 = vcmask 982016
    %v425 = vsel %vm423, %v355, 0
    %vm427 = vcmask 1043456
    %v429 = vsel %vm427, %v415, 0
    %431 = vmatprep.subr.bf16.mxu0 0
    %432 = vmatpush1.bf16.msra.mxu0 %v429
    %433 = vmatprep.subr.bf16.mxu0 0
    %434 = vmatpush1.bf16.msra.mxu0 %v414
    %435 = vmatprep.subr.bf16.mxu0 0
    %436 = vmatpush1.bf16.msra.mxu0 %v413
    %437 = vmatprep.subr.bf16.mxu0 0
    %438 = vmatpush1.bf16.msra.mxu0 %v412
    %439 = vmatprep.subr.bf16.mxu0 0
    %440 = vmatpush1.bf16.msra.mxu0 %v411
    %441 = vmatprep.subr.bf16.mxu0 0
    %442 = vmatpush1.bf16.msra.mxu0 %v410
    %443 = vmatprep.subr.bf16.mxu0 0
    %444 = vmatpush1.bf16.msra.mxu0 %v409
    %445 = vmatprep.subr.bf16.mxu0 0
    %446 = vmatpush1.bf16.msra.mxu0 %v408
    %447 = vmatprep.subr.bf16.mxu0 0
    %448 = vmatpush2.bf16.msra.mxu0 0
    %449 = vmatprep.subr.bf16.mxu0 0
    %450 = vmatpush2.bf16.msra.mxu0 0
    %451 = vmatprep.subr.bf16.mxu0 0
    %452 = vmatpush2.bf16.msra.mxu0 0
    %453 = vmatprep.subr.bf16.mxu0 0
    %454 = vmatpush2.bf16.msra.mxu0 0
    %455 = vmatprep.subr.bf16.mxu0 0
    %456 = vmatpush2.bf16.msra.mxu0 0
    %457 = vmatprep.subr.bf16.mxu0 0
    %458 = vmatpush2.bf16.msra.mxu0 0
    %459 = vmatprep.subr.bf16.mxu0 0
    %460 = vmatpush2.bf16.msra.mxu0 0
    %461 = vmatprep.subr.bf16.mxu0 0
    %462 = vmatpush2.bf16.msra.mxu0 0
    %463 = vmatprep.mubr.bf16.mxu0 0
    %464 = vmatmul.mubr.bf16.gmra.mxu0 %v425
    %v465 = vpop.f32.mrf.mxu0
    %v466 = vadd.f32 %v376, %v465
    %v467 = vpop.f32.mrf.mxu0
    %v468 = vpop.f32.mrf.mxu0
    %v469 = vpop.f32.mrf.mxu0
    %470 = vdwg.mxu0
    %v471 = vmax.f32 %v466, 0.0
    %vm472 = vcmask 680960
    %473 = vst.msk [vmem:[#allocation4] sm:$0x3] %vm472, %v471
    %v474 = vpack.c.bf16 %v471, %v471
    %v475 = vld [vmem:[%s5] sm:$0xf]
    %v476 = vld [vmem:[%s5 + $0x4] sm:$0xf]
    %v477 = vld [vmem:[%s5 + $0x8] sm:$0xf]
    %v478 = vld [vmem:[%s5 + $0xc] sm:$0xf]
    %v479 = vld [vmem:[%s5 + $0x10] sm:$0xf]
    %v480 = vld [vmem:[%s5 + $0x14] sm:$0xf]
    %v481 = vld [vmem:[%s5 + $0x18] sm:$0xf]
    %v482 = vld [vmem:[%s5 + $0x1c] sm:$0xf]
    %v483 = vld [vmem:[%s5 + $0x20] sm:$0xf]
    %v484 = vld [vmem:[%s5 + $0x24] sm:$0xf]
    %v485 = vld [vmem:[%s5 + $0x28] sm:$0x3]
    %v486 = vld [vmem:[%s6] sm:$0x1]
    %v488 = vlaneseq
    %v489 = vshrl.u32 %v488, 7
    %v490 = vsub.s32 0, %v489
    %v491 = vrot.slane %v486, %v490
    %v504 = vunpack.c.l.b16 %v475
    %v505 = vunpack.c.l.b16 %v476
    %v506 = vunpack.c.l.b16 %v477
    %v507 = vunpack.c.l.b16 %v478
    %v508 = vunpack.c.l.b16 %v479
    %v509 = vunpack.c.l.b16 %v480
    %v510 = vunpack.c.l.b16 %v481
    %v511 = vunpack.c.l.b16 %v482
    %v512 = vunpack.c.l.b16 %v483
    %v513 = vunpack.c.l.b16 %v484
    %v514 = vunpack.c.l.b16 %v485
    %v515 = vpack.c.b16 %v505, %v504
    %v516 = vpack.c.b16 %v507, %v506
    %v517 = vpack.c.b16 %v509, %v508
    %v518 = vpack.c.b16 %v511, %v510
    %v519 = vpack.c.b16 %v513, %v512
    %v520 = vpack.c.b16 %v514, %v514
    %vm526 = vcmask 687104
    %v528 = vsel %vm526, %v474, 0
    %vm530 = vcmask 1041408
    %v532 = vsel %vm530, %v520, 0
    %534 = vmatprep.subr.bf16.mxu0 0
    %535 = vmatpush1.bf16.msra.mxu0 0
    %536 = vmatprep.subr.bf16.mxu0 0
    %537 = vmatpush1.bf16.msra.mxu0 0
    %538 = vmatprep.subr.bf16.mxu0 0
    %539 = vmatpush1.bf16.msra.mxu0 %v532
    %540 = vmatprep.subr.bf16.mxu0 0
    %541 = vmatpush1.bf16.msra.mxu0 %v519
    %542 = vmatprep.subr.bf16.mxu0 0
    %543 = vmatpush1.bf16.msra.mxu0 %v518
    %544 = vmatprep.subr.bf16.mxu0 0
    %545 = vmatpush1.bf16.msra.mxu0 %v517
    %546 = vmatprep.subr.bf16.mxu0 0
    %547 = vmatpush1.bf16.msra.mxu0 %v516
    %548 = vmatprep.subr.bf16.mxu0 0
    %549 = vmatpush1.bf16.msra.mxu0 %v515
    %550 = vmatprep.subr.bf16.mxu0 0
    %551 = vmatpush2.bf16.msra.mxu0 0
    %552 = vmatprep.subr.bf16.mxu0 0
    %553 = vmatpush2.bf16.msra.mxu0 0
    %554 = vmatprep.subr.bf16.mxu0 0
    %555 = vmatpush2.bf16.msra.mxu0 0
    %556 = vmatprep.subr.bf16.mxu0 0
    %557 = vmatpush2.bf16.msra.mxu0 0
    %558 = vmatprep.subr.bf16.mxu0 0
    %559 = vmatpush2.bf16.msra.mxu0 0
    %560 = vmatprep.subr.bf16.mxu0 0
    %561 = vmatpush2.bf16.msra.mxu0 0
    %562 = vmatprep.subr.bf16.mxu0 0
    %563 = vmatpush2.bf16.msra.mxu0 0
    %564 = vmatprep.subr.bf16.mxu0 0
    %565 = vmatpush2.bf16.msra.mxu0 0
    %566 = vmatprep.mubr.bf16.mxu0 0
    %567 = vmatmul.mubr.bf16.gmra.mxu0 %v528
    %v568 = vpop.f32.mrf.mxu0
    %v569 = vadd.f32 %v491, %v568
    %v570 = vpop.f32.mrf.mxu0
    %v571 = vpop.f32.mrf.mxu0
    %v572 = vpop.f32.mrf.mxu0
    %573 = vdwg.mxu0
    %vm574 = vcmask 74752
    %575 = vst.msk [vmem:[#allocation2] sm:$0x3] %vm574, %v569
    // Predicated region
    $region30: #{net_original_forward.5} parent=1 // pred_check
      _
    $region31: #{net_original_forward.5} parent=1 // pred_check_branch
      %577 = sbr.rel (0) target = $region33
    $region32: #{net_original_forward.5} parent=1 // pred_region
      %s579 = ssub.s32 32, 32
      %580 = vsyncadd [#allocation3], %s579
      %s582 = sshll.u32 [#allocation2], 4
      %s583 = int_to_ptr.vmem [resolvable:$true] %s582
      %585 = dma.vmem_to_hbm [thread:$0]  %s583, 32, %s7, [#allocation3]
    $region33: #{net_original_forward.5} parent=1 // pred_fallthru
      _
    // Predicated region
    $region34: #{net_original_forward.5} parent=1 // pred_check
      _
    $region35: #{net_original_forward.5} parent=1 // pred_check_branch
      %587 = sbr.rel (0) target = $region37
    $region36: #{net_original_forward.5} parent=1 // pred_region
      %s589 = ssub.s32 32, 32
      %590 = vsyncadd [#allocation5], %s589
      %s592 = sshll.u32 [#allocation4], 4
      %s593 = int_to_ptr.vmem [resolvable:$true] %s592
      %595 = dma.vmem_to_hbm [thread:$0]  %s593, 32, %s8, [#allocation5]
    $region37: #{net_original_forward.5} parent=1 // pred_fallthru
      _
    // Predicated region
    $region38: #{net_original_forward.5} parent=1 // pred_check
      _
    $region39: #{net_original_forward.5} parent=1 // pred_check_branch
      %597 = sbr.rel (0) target = $region41
    $region40: #{net_original_forward.5} parent=1 // pred_region
      %s599 = ssub.s32 32, 32
      %600 = vsyncadd [#allocation5], %s599
      %s602 = sshll.u32 [#allocation6], 4
      %s603 = int_to_ptr.vmem [resolvable:$true] %s602
      %605 = dma.vmem_to_hbm [thread:$0]  %s603, 32, %s9, [#allocation5]
    $region41: #{net_original_forward.5} parent=1 // pred_fallthru
      _
    // Predicated region
    $region42: #{net_original_forward.5} parent=1 // pred_check
      _
    $region43: #{net_original_forward.5} parent=1 // pred_check_branch
      %607 = sbr.rel (0) target = $region45
    $region44: #{net_original_forward.5} parent=1 // pred_region
      %608 = dma.done [#allocation3], 32
    $region45: #{net_original_forward.5} parent=1 // pred_fallthru
      _
    // Predicated region
    $region46: #{net_original_forward.5} parent=1 // pred_check
      _
    $region47: #{net_original_forward.5} parent=1 // pred_check_branch
      %610 = sbr.rel (0) target = $region49
    $region48: #{net_original_forward.5} parent=1 // pred_region
      %611 = dma.done [#allocation5], 32
    $region49: #{net_original_forward.5} parent=1 // pred_fallthru
      _
    // Predicated region
    $region50: #{net_original_forward.5} parent=1 // pred_check
      _
    $region51: #{net_original_forward.5} parent=1 // pred_check_branch
      %613 = sbr.rel (0) target = $region53
    $region52: #{net_original_forward.5} parent=1 // pred_region
      %614 = dma.done [#allocation5], 32
    $region53: #{net_original_forward.5} parent=1 // pred_fallthru
      _
    %615 = vsyncpa [#allocation3], 1
    %616 = vsyncpa [#allocation5], 1

</llo_original>
